<compile_context>
chip_gen: v6e
topology: v6e:2x2x1
jax: 0.10.0
libtpu: 0.0.40
codegen_flags: <defaults>
</compile_context>

<pallas_src>
import math

import jax
import jax.numpy as jnp
from jax.experimental import pallas as pl
from jax.experimental.pallas import tpu as pltpu

K = 5  # kernel size used by UpSlab (k=5 -> conv padding 2, conv-T padding 1)


# ----------------------------- in-kernel helpers -----------------------------
def _stack_shifted(dst, src, off, n, shifts):
    """dst[j, off + r, :] = src[r + shifts[j]] for r in [0, n); zero where the
    shifted row index falls outside [0, n).  off / n / shifts are static, so
    every store is a static, lane-offset-0 slice."""
    c = dst.shape[-1]
    for j, s in enumerate(shifts):
        d0 = max(0, -s)              # first valid destination row
        s0 = max(0, s)               # first source row
        L = n - abs(s)               # number of valid rows
        if d0 > 0:                   # top pad rows (zero every step, tiny)
            dst[j, off:off + d0, :] = jnp.zeros((d0, c), dst.dtype)
        dst[j, off + d0:off + d0 + L, :] = src[s0:s0 + L, :].astype(dst.dtype)
        if d0 + L < n:               # bottom pad rows
            dst[j, off + d0 + L:off + n, :] = jnp.zeros((n - d0 - L, c),
                                                        dst.dtype)


def _upslab_kernel(x_ref, t1_ref, b1_ref, t2_ref, b2_ref, t3_ref, bt_ref,
                   o_ref, kx_s, ky1_s, ky2_s):
    """UpSlab forward for `bb` images, fully VMEM-resident.

    x_ref  : (bb, H, W*Cin)  bf16  lane-packed input rows
    t1_ref : (k, W*Cin, W*m) bf16  conv1 per-row-tap width-Toeplitz weights
    t2_ref : (k, W*m,  W*m)  bf16  conv2 per-row-tap width-Toeplitz weights
    t3_ref : (3, W*m, 4*W*m) bf16  merged polyphase conv-transpose taps
                                   (even output row in lanes [0, 2*W*m),
                                    odd  output row in lanes [2*W*m, 4*W*m))
    b*_ref : (1, lanes) f32        biases pre-tiled over the lane axis
    o_ref  : (bb, H, 4*W*m) f32    o[i, r, :] = [out row 2r | out row 2r+1]
    kx_s / ky1_s / ky2_s : f32 tap-stacked activation scratch (per-image row
                           padding baked in as zero rows).
    """
    f32, bf16 = jnp.float32, jnp.bfloat16
    bb, H, _ = x_ref.shape
    k = t1_ref.shape[0]
    Wm = t1_ref.shape[-1]
    p = (k - 1) // 2
    conv_shifts = tuple(a - p for a in range(k))     # 'same' conv row taps

    # ---- stage 1: Conv2d(k, 'same') + ReLU ----------------------------------
    for i in range(bb):
        _stack_shifted(kx_s, x_ref[i], i * H, H, conv_shifts)
    acc = jnp.zeros((bb * H, Wm), f32)
    for a in range(k):                               # M = bb*H rows per matmul
        acc += jnp.dot(kx_s[a].astype(bf16), t1_ref[a],
                       preferred_element_type=f32)
    y1 = jnp.maximum(acc + b1_ref[...], 0.0)

    # ---- stage 2: Conv2d(k, 'same') + ReLU ----------------------------------
    for i in range(bb):
        _stack_shifted(ky1_s, y1[i * H:(i + 1) * H], i * H, H, conv_shifts)
    acc = jnp.zeros((bb * H, Wm), f32)
    for a in range(k):
        acc += jnp.dot(ky1_s[a].astype(bf16), t2_ref[a],
                       preferred_element_type=f32)
    y2 = jnp.maximum(acc + b2_ref[...], 0.0)

    # ---- stage 3: ConvTranspose2d(k, stride=2, pad=1) + crop, polyphase -----
    # tap j of ky2_s holds y2[r - 1 + j]; the merged table emits even and odd
    # output rows side by side (lane-dense N = 4*W*m result).
    for i in range(bb):
        _stack_shifted(ky2_s, y2[i * H:(i + 1) * H], i * H, H, (-1, 0, 1))
    acc = jnp.zeros((bb * H, t3_ref.shape[-1]), f32)
    for a in range(3):
        acc += jnp.dot(ky2_s[a].astype(bf16), t3_ref[a],
                       preferred_element_type=f32)
    res = (acc + bt_ref[...]).astype(o_ref.dtype)    # (bb*H, 4*W*m)
    for i in range(bb):
        o_ref[i] = res[i * H:(i + 1) * H]


# ---------------------- Toeplitz weight construction -------------------------
def _conv_row_toeplitz(w_hwio, W, p):
    """'same' conv (k,k,Cin,Cout) HWIO -> per-row-tap width-Toeplitz matrices.

    T[kh, wi*Cin+ci, wo*Cout+co] = w[kh, wi-wo+p, ci, co] (0 where kw is OOB),
    so out_row[h] = sum_kh x_row[h+kh-p] @ T[kh] with the width zero-padding
    folded into the masked Toeplitz weights."""
    k, _, Cin, Cout = w_hwio.shape
    wi = jnp.arange(W)[:, None]
    wo = jnp.arange(W)[None, :]
    kw = wi - wo + p
    valid = (kw >= 0) & (kw < k)
    g = w_hwio[:, jnp.clip(kw, 0, k - 1)]               # (k, W, W, Cin, Cout)
    g = jnp.where(valid[None, :, :, None, None], g, 0.0)
    return jnp.transpose(g, (0, 1, 3, 2, 4)).reshape(k, W * Cin, W * Cout)


def _deconv_row_toeplitz(wt_pt, W):
    """PyTorch ConvTranspose2d weight (Cin,Cout,k,k), stride 2, padding 1 ->
    per-kh Toeplitz matrices mapping W*Cin input lanes to 2W*Cout output lanes:
    T[kh, wi*Cin+ci, wo*Cout+co] = wt[ci, co, kh, wo-2*wi+1]  (0 where OOB)."""
    Cin, Cout, k, _ = wt_pt.shape
    wi = jnp.arange(W)[:, None]
    wo = jnp.arange(2 * W)[None, :]
    kw = wo - 2 * wi + 1
    valid = (kw >= 0) & (kw < k)
    g = wt_pt[:, :, :, jnp.clip(kw, 0, k - 1)]          # (Cin, Cout, k, W, 2W)
    g = jnp.where(valid[None, None, None], g, 0.0)
    return jnp.transpose(g, (2, 3, 0, 4, 1)).reshape(k, W * Cin, 2 * W * Cout)


def pack_params(params, W, k=K):
    """Build the kernel's weight tables ONCE (param-load time), in bf16."""
    assert k == 5, "polyphase deconv tap tables below are derived for k=5"
    p = (k - 1) // 2
    kk, _, Cin, m = params["w1"].shape
    assert kk == k
    Wm = W * m
    t1 = _conv_row_toeplitz(params["w1"], W, p)          # (k, W*Cin, W*m)
    t2 = _conv_row_toeplitz(params["w2"], W, p)          # (k, W*m,  W*m)
    t3 = _deconv_row_toeplitz(params["wt_pt"], W)        # (k, W*m, 2W*m)
    # output row 2i   uses y rows {i-1, i}      with kh = {3, 1}
    # output row 2i+1 uses y rows {i-1, i, i+1} with kh = {4, 2, 0}
    even = jnp.concatenate([t3[jnp.array([3, 1])],
                            jnp.zeros((1, Wm, 2 * Wm), t3.dtype)], axis=0)
    odd = t3[jnp.array([4, 2, 0])]
    t3m = jnp.concatenate([even, odd], axis=-1)          # (3, W*m, 4W*m)
    return dict(
        t1=t1.astype(jnp.bfloat16),
        t2=t2.astype(jnp.bfloat16),
        t3=t3m.astype(jnp.bfloat16),
        b1=jnp.tile(params["b1"], W)[None, :].astype(jnp.float32),
        b2=jnp.tile(params["b2"], W)[None, :].astype(jnp.float32),
        bt=jnp.tile(params["bt"], 4 * W)[None, :].astype(jnp.float32),
        meta=dict(W=int(W), Cin=int(Cin), m=int(m), k=int(k)),
    )


# ----------------------------- public wrappers --------------------------------
def _pick_bb(B, H, target_rows=256):
    """Images per grid step: aim for ~256 MXU rows per matmul, but keep >=2
    grid steps (v7x megacore) when that still gives >=128 rows per step."""
    bb = max(1, min(B, max(1, target_rows // H)))
    while B % bb:
        bb -= 1
    if B // bb < 2:
        for cand in range(bb - 1, 0, -1):
            if B % cand == 0 and cand * H >= 128 and B // cand >= 2:
                bb = cand
                break
    return bb


def upslab_forward_packed(x_packed, packed, bb=None):
    """Lane-packed forward.  x_packed: (B, H, W*Cin) rows (NHWC flattened).
    Returns (B, 2H, 2W*m) f32, already row-interleaved (free reshape only)."""
    meta = packed["meta"]
    W, Cin, m, k = meta["W"], meta["Cin"], meta["m"], meta["k"]
    B, H, WC = x_packed.shape
    assert WC == W * Cin
    Wm = W * m
    if bb is None:
        bb = _pick_bb(B, H)
    assert B % bb == 0

    # NOTE: weights/scratch are tiny here (<1 MiB).  When scaling W/C (tables
    # grow O(k*W^2*C^2)), add pipeline_mode=pl.Buffered(1) on the weight specs
    # and raise vmem_limit_bytes -- v7x (64 MiB VMEM) hits the cliff first.
    out = pl.pallas_call(
        _upslab_kernel,
        out_shape=jax.ShapeDtypeStruct((B, H, 4 * Wm), jnp.float32),
        grid=(B // bb,),
        in_specs=[
            pl.BlockSpec((bb, H, WC), lambda b: (b, 0, 0)),
            pl.BlockSpec((k, WC, Wm), lambda b: (0, 0, 0)),
            pl.BlockSpec((1, Wm), lambda b: (0, 0)),
            pl.BlockSpec((k, Wm, Wm), lambda b: (0, 0, 0)),
            pl.BlockSpec((1, Wm), lambda b: (0, 0)),
            pl.BlockSpec((3, Wm, 4 * Wm), lambda b: (0, 0, 0)),
            pl.BlockSpec((1, 4 * Wm), lambda b: (0, 0)),
        ],
        out_specs=pl.BlockSpec((bb, H, 4 * Wm), lambda b: (b, 0, 0)),
        scratch_shapes=[
            pltpu.VMEM((k, bb * H, WC), jnp.float32),    # conv1 tap stack
            pltpu.VMEM((k, bb * H, Wm), jnp.float32),    # conv2 tap stack
            pltpu.VMEM((3, bb * H, Wm), jnp.float32),    # deconv tap stack
        ],
        compiler_params=pltpu.CompilerParams(
            dimension_semantics=("parallel",)),          # megacore on v7x
    )(x_packed.astype(jnp.bfloat16), packed["t1"], packed["b1"],
      packed["t2"], packed["b2"], packed["t3"], packed["bt"])

    # (B, H, 4*W*m) row-major IS the row-interleaved (B, 2H, 2W*m) slab.
    return out.reshape(B, 2 * H, 2 * Wm)


def upslab_forward(x_nchw, packed, bb=None):
    """PyTorch-compatible NCHW wrapper (layout plumbing only)."""
    meta = packed["meta"]
    W, Cin, m = meta["W"], meta["Cin"], meta["m"]
    B, C, H, Wx = x_nchw.shape
    assert C == Cin and Wx == W
    x_p = jnp.transpose(x_nchw, (0, 2, 3, 1)).reshape(B, H, W * Cin)
    out = upslab_forward_packed(x_p, packed, bb=bb)      # (B, 2H, 2W*m)
    out = out.reshape(B, 2 * H, 2 * W, m)
    return jnp.transpose(out, (0, 3, 1, 2))              # NCHW


# ------------------------ deterministic parameters ---------------------------
def init_params(key, n, k=K):
    m = n // 2
    ks = jax.random.split(key, 6)

    def u(kk, shape, fan_in):
        bound = 1.0 / math.sqrt(fan_in)
        return jax.random.uniform(kk, shape, jnp.float32, -bound, bound)

    return dict(
        w1=u(ks[0], (k, k, n, m), n * k * k),        # HWIO
        b1=u(ks[1], (m,), n * k * k),
        w2=u(ks[2], (k, k, m, m), m * k * k),        # HWIO
        b2=u(ks[3], (m,), m * k * k),
        wt_pt=u(ks[4], (m, m, k, k), m * k * k),     # ConvTranspose2d layout
        bt=u(ks[5], (m,), m * k * k),
    )


# --------------------------- pure-JAX reference ------------------------------
def ref_forward(x_nchw, params, k=K, emulate_bf16=False):
    """UpSlab reference.  With emulate_bf16=True the matmul operands (input,
    conv weights, intermediate activations) are rounded to bf16, matching the
    kernel's bf16-in / f32-accumulate numerics."""
    rnd = ((lambda a: a.astype(jnp.bfloat16).astype(jnp.float32))
           if emulate_bf16 else (lambda a: a))
    prec = jax.lax.Precision.HIGHEST
    p = (k - 1) // 2
    pt = p - 1
    dn = ("NHWC", "HWIO", "NHWC")
    x = rnd(jnp.transpose(x_nchw, (0, 2, 3, 1)))
    y = jax.lax.conv_general_dilated(x, rnd(params["w1"]), (1, 1),
                                     [(p, p), (p, p)], dimension_numbers=dn,
                                     precision=prec) + params["b1"]
    y = rnd(jnp.maximum(y, 0.0))
    y = jax.lax.conv_general_dilated(y, rnd(params["w2"]), (1, 1),
                                     [(p, p), (p, p)], dimension_numbers=dn,
                                     precision=prec) + params["b2"]
    y = rnd(jnp.maximum(y, 0.0))
    # transpose conv == dilated conv with flipped, in/out-swapped kernel
    wt = jnp.transpose(params["wt_pt"][:, :, ::-1, ::-1], (2, 3, 0, 1))
    q = k - 1 - pt
    y = jax.lax.conv_general_dilated(y, rnd(wt), (1, 1), [(q, q), (q, q)],
                                     lhs_dilation=(2, 2), dimension_numbers=dn,
                                     precision=prec) + params["bt"]
    y = y[:, :-1, :-1, :]
    return jnp.transpose(y, (0, 3, 1, 2))


if __name__ == "__main__":
    n, B, H, W = 8, 2, 16, 16          # UpSlab(n=8): 8 -> 4 channels, 2x up
    key = jax.random.PRNGKey(0)
    kx, kp = jax.random.split(key)
    x = jax.random.normal(kx, (B, n, H, W), jnp.float32)   # NCHW like PyTorch
    params = init_params(kp, n, K)

    packed = pack_params(params, W, K)   # built ONCE, at param-load time
    fwd = jax.jit(lambda xx: upslab_forward(xx, packed))
    out = jax.block_until_ready(fwd(x))
    assert out.shape == (B, n // 2, 2 * H, 2 * W), out.shape

    ref = ref_forward(x, params, K, emulate_bf16=True)
    err = float(jnp.max(jnp.abs(out - ref)))
    assert jnp.allclose(out, ref, rtol=5e-3, atol=5e-3), err
    print("KERNEL_OK")
</pallas_src>

<mosaic_0001>
module attributes {stable_mosaic.version = 11 : i64} {
  func.func @_upslab_kernel(%arg0: i32, %arg1: memref<2x16x128xbf16, #tpu.memory_space<vmem>>, %arg2: memref<5x128x64xbf16, #tpu.memory_space<vmem>>, %arg3: memref<1x64xf32, #tpu.memory_space<vmem>>, %arg4: memref<5x64x64xbf16, #tpu.memory_space<vmem>>, %arg5: memref<1x64xf32, #tpu.memory_space<vmem>>, %arg6: memref<3x64x256xbf16, #tpu.memory_space<vmem>>, %arg7: memref<1x256xf32, #tpu.memory_space<vmem>>, %arg8: memref<2x16x256xf32, #tpu.memory_space<vmem>>, %arg9: memref<5x32x128xf32, #tpu.memory_space<vmem>>, %arg10: memref<5x32x64xf32, #tpu.memory_space<vmem>>, %arg11: memref<3x32x64xf32, #tpu.memory_space<vmem>>) attributes {dimension_semantics = [#tpu.dimension_semantics<parallel>], iteration_bounds = array<i64: 1>, scalar_prefetch = 0 : i64, scratch_operands = 3 : i64, tpu.core_type = #tpu.core_type<tc>, window_params = [{transform_indices = @transform_0, window_bounds = array<i64: 2, 16, 128>}, {pipeline_mode = #tpu.pipeline_mode<synchronous>, transform_indices = @transform_1, window_bounds = array<i64: 5, 128, 64>}, {pipeline_mode = #tpu.pipeline_mode<synchronous>, transform_indices = @transform_2, window_bounds = array<i64: 1, 64>}, {pipeline_mode = #tpu.pipeline_mode<synchronous>, transform_indices = @transform_3, window_bounds = array<i64: 5, 64, 64>}, {pipeline_mode = #tpu.pipeline_mode<synchronous>, transform_indices = @transform_4, window_bounds = array<i64: 1, 64>}, {pipeline_mode = #tpu.pipeline_mode<synchronous>, transform_indices = @transform_5, window_bounds = array<i64: 3, 64, 256>}, {pipeline_mode = #tpu.pipeline_mode<synchronous>, transform_indices = @transform_6, window_bounds = array<i64: 1, 256>}, {transform_indices = @transform_7, window_bounds = array<i64: 2, 16, 256>}]} {
    %c0 = arith.constant 0 : index
    %c0_0 = arith.constant 0 : index
    %c0_1 = arith.constant 0 : index
    %0 = vector.load %arg1[%c0, %c0_0, %c0_1] : memref<2x16x128xbf16, #tpu.memory_space<vmem>>, vector<1x16x128xbf16>
    %1 = vector.shape_cast %0 : vector<1x16x128xbf16> to vector<16x128xbf16>
    %cst = arith.constant 0.000000e+00 : f32
    %2 = vector.broadcast %cst : f32 to vector<2x128xf32>
    %c0_2 = arith.constant 0 : index
    %c0_3 = arith.constant 0 : index
    %c0_4 = arith.constant 0 : index
    %3 = vector.load %arg9[%c0_2, %c0_3, %c0_4] : memref<5x32x128xf32, #tpu.memory_space<vmem>>, vector<1x2x128xf32>
    %4 = vector.shape_cast %3 : vector<1x2x128xf32> to vector<2x128xf32>
    %5 = vector.shape_cast %2 : vector<2x128xf32> to vector<1x2x128xf32>
    tpu.vector_store %arg9[%c0_2, %c0_3, %c0_4], %5 {strides = array<i32>} : memref<5x32x128xf32, #tpu.memory_space<vmem>>, vector<1x2x128xf32>,
    %6 = vector.extract_strided_slice %1 {offsets = [0, 0], sizes = [14, 128], strides = [1, 1]} : vector<16x128xbf16> to vector<14x128xbf16>
    %7 = arith.extf %6 : vector<14x128xbf16> to vector<14x128xf32>
    %c0_5 = arith.constant 0 : index
    %c2 = arith.constant 2 : index
    %c0_6 = arith.constant 0 : index
    %8 = vector.load %arg9[%c0_5, %c2, %c0_6] : memref<5x32x128xf32, #tpu.memory_space<vmem>>, vector<1x14x128xf32>
    %9 = vector.shape_cast %8 : vector<1x14x128xf32> to vector<14x128xf32>
    %10 = vector.shape_cast %7 : vector<14x128xf32> to vector<1x14x128xf32>
    tpu.vector_store %arg9[%c0_5, %c2, %c0_6], %10 {strides = array<i32>} : memref<5x32x128xf32, #tpu.memory_space<vmem>>, vector<1x14x128xf32>,
    %cst_7 = arith.constant 0.000000e+00 : f32
    %11 = vector.broadcast %cst_7 : f32 to vector<1x128xf32>
    %c1 = arith.constant 1 : index
    %c0_8 = arith.constant 0 : index
    %c0_9 = arith.constant 0 : index
    %12 = vector.load %arg9[%c1, %c0_8, %c0_9] : memref<5x32x128xf32, #tpu.memory_space<vmem>>, vector<1x1x128xf32>
    %13 = vector.shape_cast %12 : vector<1x1x128xf32> to vector<1x128xf32>
    %14 = vector.shape_cast %11 : vector<1x128xf32> to vector<1x1x128xf32>
    tpu.vector_store %arg9[%c1, %c0_8, %c0_9], %14 {strides = array<i32>} : memref<5x32x128xf32, #tpu.memory_space<vmem>>, vector<1x1x128xf32>,
    %15 = vector.extract_strided_slice %1 {offsets = [0, 0], sizes = [15, 128], strides = [1, 1]} : vector<16x128xbf16> to vector<15x128xbf16>
    %16 = arith.extf %15 : vector<15x128xbf16> to vector<15x128xf32>
    %c1_10 = arith.constant 1 : index
    %c1_11 = arith.constant 1 : index
    %c0_12 = arith.constant 0 : index
    %17 = vector.load %arg9[%c1_10, %c1_11, %c0_12] : memref<5x32x128xf32, #tpu.memory_space<vmem>>, vector<1x15x128xf32>
    %18 = vector.shape_cast %17 : vector<1x15x128xf32> to vector<15x128xf32>
    %19 = vector.shape_cast %16 : vector<15x128xf32> to vector<1x15x128xf32>
    tpu.vector_store %arg9[%c1_10, %c1_11, %c0_12], %19 {strides = array<i32>} : memref<5x32x128xf32, #tpu.memory_space<vmem>>, vector<1x15x128xf32>,
    %20 = arith.extf %1 : vector<16x128xbf16> to vector<16x128xf32>
    %c2_13 = arith.constant 2 : index
    %c0_14 = arith.constant 0 : index
    %c0_15 = arith.constant 0 : index
    %21 = vector.load %arg9[%c2_13, %c0_14, %c0_15] : memref<5x32x128xf32, #tpu.memory_space<vmem>>, vector<1x16x128xf32>
    %22 = vector.shape_cast %21 : vector<1x16x128xf32> to vector<16x128xf32>
    %23 = vector.shape_cast %20 : vector<16x128xf32> to vector<1x16x128xf32>
    tpu.vector_store %arg9[%c2_13, %c0_14, %c0_15], %23 {strides = array<i32>} : memref<5x32x128xf32, #tpu.memory_space<vmem>>, vector<1x16x128xf32>,
    %24 = vector.extract_strided_slice %1 {offsets = [1, 0], sizes = [15, 128], strides = [1, 1]} : vector<16x128xbf16> to vector<15x128xbf16>
    %25 = arith.extf %24 : vector<15x128xbf16> to vector<15x128xf32>
    %c3 = arith.constant 3 : index
    %c0_16 = arith.constant 0 : index
    %c0_17 = arith.constant 0 : index
    %26 = vector.load %arg9[%c3, %c0_16, %c0_17] : memref<5x32x128xf32, #tpu.memory_space<vmem>>, vector<1x15x128xf32>
    %27 = vector.shape_cast %26 : vector<1x15x128xf32> to vector<15x128xf32>
    %28 = vector.shape_cast %25 : vector<15x128xf32> to vector<1x15x128xf32>
    tpu.vector_store %arg9[%c3, %c0_16, %c0_17], %28 {strides = array<i32>} : memref<5x32x128xf32, #tpu.memory_space<vmem>>, vector<1x15x128xf32>,
    %cst_18 = arith.constant 0.000000e+00 : f32
    %29 = vector.broadcast %cst_18 : f32 to vector<1x128xf32>
    %c3_19 = arith.constant 3 : index
    %c15 = arith.constant 15 : index
    %c0_20 = arith.constant 0 : index
    %30 = vector.load %arg9[%c3_19, %c15, %c0_20] : memref<5x32x128xf32, #tpu.memory_space<vmem>>, vector<1x1x128xf32>
    %31 = vector.shape_cast %30 : vector<1x1x128xf32> to vector<1x128xf32>
    %32 = vector.shape_cast %29 : vector<1x128xf32> to vector<1x1x128xf32>
    tpu.vector_store %arg9[%c3_19, %c15, %c0_20], %32 {strides = array<i32>} : memref<5x32x128xf32, #tpu.memory_space<vmem>>, vector<1x1x128xf32>,
    %33 = vector.extract_strided_slice %1 {offsets = [2, 0], sizes = [14, 128], strides = [1, 1]} : vector<16x128xbf16> to vector<14x128xbf16>
    %34 = arith.extf %33 : vector<14x128xbf16> to vector<14x128xf32>
    %c4 = arith.constant 4 : index
    %c0_21 = arith.constant 0 : index
    %c0_22 = arith.constant 0 : index
    %35 = vector.load %arg9[%c4, %c0_21, %c0_22] : memref<5x32x128xf32, #tpu.memory_space<vmem>>, vector<1x14x128xf32>
    %36 = vector.shape_cast %35 : vector<1x14x128xf32> to vector<14x128xf32>
    %37 = vector.shape_cast %34 : vector<14x128xf32> to vector<1x14x128xf32>
    tpu.vector_store %arg9[%c4, %c0_21, %c0_22], %37 {strides = array<i32>} : memref<5x32x128xf32, #tpu.memory_space<vmem>>, vector<1x14x128xf32>,
    %cst_23 = arith.constant 0.000000e+00 : f32
    %38 = vector.broadcast %cst_23 : f32 to vector<2x128xf32>
    %c4_24 = arith.constant 4 : index
    %c14 = arith.constant 14 : index
    %c0_25 = arith.constant 0 : index
    %39 = vector.load %arg9[%c4_24, %c14, %c0_25] : memref<5x32x128xf32, #tpu.memory_space<vmem>>, vector<1x2x128xf32>
    %40 = vector.shape_cast %39 : vector<1x2x128xf32> to vector<2x128xf32>
    %41 = vector.shape_cast %38 : vector<2x128xf32> to vector<1x2x128xf32>
    tpu.vector_store %arg9[%c4_24, %c14, %c0_25], %41 {strides = array<i32>} : memref<5x32x128xf32, #tpu.memory_space<vmem>>, vector<1x2x128xf32>,
    %c1_26 = arith.constant 1 : index
    %c0_27 = arith.constant 0 : index
    %c0_28 = arith.constant 0 : index
    %42 = vector.load %arg1[%c1_26, %c0_27, %c0_28] : memref<2x16x128xbf16, #tpu.memory_space<vmem>>, vector<1x16x128xbf16>
    %43 = vector.shape_cast %42 : vector<1x16x128xbf16> to vector<16x128xbf16>
    %cst_29 = arith.constant 0.000000e+00 : f32
    %44 = vector.broadcast %cst_29 : f32 to vector<2x128xf32>
    %c0_30 = arith.constant 0 : index
    %c16 = arith.constant 16 : index
    %c0_31 = arith.constant 0 : index
    %45 = vector.load %arg9[%c0_30, %c16, %c0_31] : memref<5x32x128xf32, #tpu.memory_space<vmem>>, vector<1x2x128xf32>
    %46 = vector.shape_cast %45 : vector<1x2x128xf32> to vector<2x128xf32>
    %47 = vector.shape_cast %44 : vector<2x128xf32> to vector<1x2x128xf32>
    tpu.vector_store %arg9[%c0_30, %c16, %c0_31], %47 {strides = array<i32>} : memref<5x32x128xf32, #tpu.memory_space<vmem>>, vector<1x2x128xf32>,
    %48 = vector.extract_strided_slice %43 {offsets = [0, 0], sizes = [14, 128], strides = [1, 1]} : vector<16x128xbf16> to vector<14x128xbf16>
    %49 = arith.extf %48 : vector<14x128xbf16> to vector<14x128xf32>
    %c0_32 = arith.constant 0 : index
    %c18 = arith.constant 18 : index
    %c0_33 = arith.constant 0 : index
    %50 = vector.load %arg9[%c0_32, %c18, %c0_33] : memref<5x32x128xf32, #tpu.memory_space<vmem>>, vector<1x14x128xf32>
    %51 = vector.shape_cast %50 : vector<1x14x128xf32> to vector<14x128xf32>
    %52 = vector.shape_cast %49 : vector<14x128xf32> to vector<1x14x128xf32>
    tpu.vector_store %arg9[%c0_32, %c18, %c0_33], %52 {strides = array<i32>} : memref<5x32x128xf32, #tpu.memory_space<vmem>>, vector<1x14x128xf32>,
    %cst_34 = arith.constant 0.000000e+00 : f32
    %53 = vector.broadcast %cst_34 : f32 to vector<1x128xf32>
    %c1_35 = arith.constant 1 : index
    %c16_36 = arith.constant 16 : index
    %c0_37 = arith.constant 0 : index
    %54 = vector.load %arg9[%c1_35, %c16_36, %c0_37] : memref<5x32x128xf32, #tpu.memory_space<vmem>>, vector<1x1x128xf32>
    %55 = vector.shape_cast %54 : vector<1x1x128xf32> to vector<1x128xf32>
    %56 = vector.shape_cast %53 : vector<1x128xf32> to vector<1x1x128xf32>
    tpu.vector_store %arg9[%c1_35, %c16_36, %c0_37], %56 {strides = array<i32>} : memref<5x32x128xf32, #tpu.memory_space<vmem>>, vector<1x1x128xf32>,
    %57 = vector.extract_strided_slice %43 {offsets = [0, 0], sizes = [15, 128], strides = [1, 1]} : vector<16x128xbf16> to vector<15x128xbf16>
    %58 = arith.extf %57 : vector<15x128xbf16> to vector<15x128xf32>
    %c1_38 = arith.constant 1 : index
    %c17 = arith.constant 17 : index
    %c0_39 = arith.constant 0 : index
    %59 = vector.load %arg9[%c1_38, %c17, %c0_39] : memref<5x32x128xf32, #tpu.memory_space<vmem>>, vector<1x15x128xf32>
    %60 = vector.shape_cast %59 : vector<1x15x128xf32> to vector<15x128xf32>
    %61 = vector.shape_cast %58 : vector<15x128xf32> to vector<1x15x128xf32>
    tpu.vector_store %arg9[%c1_38, %c17, %c0_39], %61 {strides = array<i32>} : memref<5x32x128xf32, #tpu.memory_space<vmem>>, vector<1x15x128xf32>,
    %62 = arith.extf %43 : vector<16x128xbf16> to vector<16x128xf32>
    %c2_40 = arith.constant 2 : index
    %c16_41 = arith.constant 16 : index
    %c0_42 = arith.constant 0 : index
    %63 = vector.load %arg9[%c2_40, %c16_41, %c0_42] : memref<5x32x128xf32, #tpu.memory_space<vmem>>, vector<1x16x128xf32>
    %64 = vector.shape_cast %63 : vector<1x16x128xf32> to vector<16x128xf32>
    %65 = vector.shape_cast %62 : vector<16x128xf32> to vector<1x16x128xf32>
    tpu.vector_store %arg9[%c2_40, %c16_41, %c0_42], %65 {strides = array<i32>} : memref<5x32x128xf32, #tpu.memory_space<vmem>>, vector<1x16x128xf32>,
    %66 = vector.extract_strided_slice %43 {offsets = [1, 0], sizes = [15, 128], strides = [1, 1]} : vector<16x128xbf16> to vector<15x128xbf16>
    %67 = arith.extf %66 : vector<15x128xbf16> to vector<15x128xf32>
    %c3_43 = arith.constant 3 : index
    %c16_44 = arith.constant 16 : index
    %c0_45 = arith.constant 0 : index
    %68 = vector.load %arg9[%c3_43, %c16_44, %c0_45] : memref<5x32x128xf32, #tpu.memory_space<vmem>>, vector<1x15x128xf32>
    %69 = vector.shape_cast %68 : vector<1x15x128xf32> to vector<15x128xf32>
    %70 = vector.shape_cast %67 : vector<15x128xf32> to vector<1x15x128xf32>
    tpu.vector_store %arg9[%c3_43, %c16_44, %c0_45], %70 {strides = array<i32>} : memref<5x32x128xf32, #tpu.memory_space<vmem>>, vector<1x15x128xf32>,
    %cst_46 = arith.constant 0.000000e+00 : f32
    %71 = vector.broadcast %cst_46 : f32 to vector<1x128xf32>
    %c3_47 = arith.constant 3 : index
    %c31 = arith.constant 31 : index
    %c0_48 = arith.constant 0 : index
    %72 = vector.load %arg9[%c3_47, %c31, %c0_48] : memref<5x32x128xf32, #tpu.memory_space<vmem>>, vector<1x1x128xf32>
    %73 = vector.shape_cast %72 : vector<1x1x128xf32> to vector<1x128xf32>
    %74 = vector.shape_cast %71 : vector<1x128xf32> to vector<1x1x128xf32>
    tpu.vector_store %arg9[%c3_47, %c31, %c0_48], %74 {strides = array<i32>} : memref<5x32x128xf32, #tpu.memory_space<vmem>>, vector<1x1x128xf32>,
    %75 = vector.extract_strided_slice %43 {offsets = [2, 0], sizes = [14, 128], strides = [1, 1]} : vector<16x128xbf16> to vector<14x128xbf16>
    %76 = arith.extf %75 : vector<14x128xbf16> to vector<14x128xf32>
    %c4_49 = arith.constant 4 : index
    %c16_50 = arith.constant 16 : index
    %c0_51 = arith.constant 0 : index
    %77 = vector.load %arg9[%c4_49, %c16_50, %c0_51] : memref<5x32x128xf32, #tpu.memory_space<vmem>>, vector<1x14x128xf32>
    %78 = vector.shape_cast %77 : vector<1x14x128xf32> to vector<14x128xf32>
    %79 = vector.shape_cast %76 : vector<14x128xf32> to vector<1x14x128xf32>
    tpu.vector_store %arg9[%c4_49, %c16_50, %c0_51], %79 {strides = array<i32>} : memref<5x32x128xf32, #tpu.memory_space<vmem>>, vector<1x14x128xf32>,
    %cst_52 = arith.constant 0.000000e+00 : f32
    %80 = vector.broadcast %cst_52 : f32 to vector<2x128xf32>
    %c4_53 = arith.constant 4 : index
    %c30 = arith.constant 30 : index
    %c0_54 = arith.constant 0 : index
    %81 = vector.load %arg9[%c4_53, %c30, %c0_54] : memref<5x32x128xf32, #tpu.memory_space<vmem>>, vector<1x2x128xf32>
    %82 = vector.shape_cast %81 : vector<1x2x128xf32> to vector<2x128xf32>
    %83 = vector.shape_cast %80 : vector<2x128xf32> to vector<1x2x128xf32>
    tpu.vector_store %arg9[%c4_53, %c30, %c0_54], %83 {strides = array<i32>} : memref<5x32x128xf32, #tpu.memory_space<vmem>>, vector<1x2x128xf32>,
    %cst_55 = arith.constant 0.000000e+00 : f32
    %84 = vector.broadcast %cst_55 : f32 to vector<32x64xf32>
    %c0_56 = arith.constant 0 : index
    %c0_57 = arith.constant 0 : index
    %c0_58 = arith.constant 0 : index
    %85 = vector.load %arg9[%c0_56, %c0_57, %c0_58] : memref<5x32x128xf32, #tpu.memory_space<vmem>>, vector<1x32x128xf32>
    %86 = vector.shape_cast %85 : vector<1x32x128xf32> to vector<32x128xf32>
    %87 = arith.truncf %86 : vector<32x128xf32> to vector<32x128xbf16>
    %c0_59 = arith.constant 0 : index
    %c0_60 = arith.constant 0 : index
    %c0_61 = arith.constant 0 : index
    %88 = vector.load %arg2[%c0_59, %c0_60, %c0_61] : memref<5x128x64xbf16, #tpu.memory_space<vmem>>, vector<1x128x64xbf16>
    %89 = vector.shape_cast %88 : vector<1x128x64xbf16> to vector<128x64xbf16>
    %cst_62 = arith.constant dense<0.000000e+00> : vector<32x64xf32>
    %90 = tpu.matmul %87, %89, %cst_62 {dimension_numbers = #tpu.dot_dimension_numbers<[1], [0], [0], [1], [0, 0, 1, 1], [], []>} : vector<32x128xbf16>, vector<128x64xbf16>, vector<32x64xf32> -> vector<32x64xf32>
    %91 = arith.addf %84, %90 : vector<32x64xf32>
    %c1_63 = arith.constant 1 : index
    %c0_64 = arith.constant 0 : index
    %c0_65 = arith.constant 0 : index
    %92 = vector.load %arg9[%c1_63, %c0_64, %c0_65] : memref<5x32x128xf32, #tpu.memory_space<vmem>>, vector<1x32x128xf32>
    %93 = vector.shape_cast %92 : vector<1x32x128xf32> to vector<32x128xf32>
    %94 = arith.truncf %93 : vector<32x128xf32> to vector<32x128xbf16>
    %c1_66 = arith.constant 1 : index
    %c0_67 = arith.constant 0 : index
    %c0_68 = arith.constant 0 : index
    %95 = vector.load %arg2[%c1_66, %c0_67, %c0_68] : memref<5x128x64xbf16, #tpu.memory_space<vmem>>, vector<1x128x64xbf16>
    %96 = vector.shape_cast %95 : vector<1x128x64xbf16> to vector<128x64xbf16>
    %cst_69 = arith.constant dense<0.000000e+00> : vector<32x64xf32>
    %97 = tpu.matmul %94, %96, %cst_69 {dimension_numbers = #tpu.dot_dimension_numbers<[1], [0], [0], [1], [0, 0, 1, 1], [], []>} : vector<32x128xbf16>, vector<128x64xbf16>, vector<32x64xf32> -> vector<32x64xf32>
    %98 = arith.addf %91, %97 : vector<32x64xf32>
    %c2_70 = arith.constant 2 : index
    %c0_71 = arith.constant 0 : index
    %c0_72 = arith.constant 0 : index
    %99 = vector.load %arg9[%c2_70, %c0_71, %c0_72] : memref<5x32x128xf32, #tpu.memory_space<vmem>>, vector<1x32x128xf32>
    %100 = vector.shape_cast %99 : vector<1x32x128xf32> to vector<32x128xf32>
    %101 = arith.truncf %100 : vector<32x128xf32> to vector<32x128xbf16>
    %c2_73 = arith.constant 2 : index
    %c0_74 = arith.constant 0 : index
    %c0_75 = arith.constant 0 : index
    %102 = vector.load %arg2[%c2_73, %c0_74, %c0_75] : memref<5x128x64xbf16, #tpu.memory_space<vmem>>, vector<1x128x64xbf16>
    %103 = vector.shape_cast %102 : vector<1x128x64xbf16> to vector<128x64xbf16>
    %cst_76 = arith.constant dense<0.000000e+00> : vector<32x64xf32>
    %104 = tpu.matmul %101, %103, %cst_76 {dimension_numbers = #tpu.dot_dimension_numbers<[1], [0], [0], [1], [0, 0, 1, 1], [], []>} : vector<32x128xbf16>, vector<128x64xbf16>, vector<32x64xf32> -> vector<32x64xf32>
    %105 = arith.addf %98, %104 : vector<32x64xf32>
    %c3_77 = arith.constant 3 : index
    %c0_78 = arith.constant 0 : index
    %c0_79 = arith.constant 0 : index
    %106 = vector.load %arg9[%c3_77, %c0_78, %c0_79] : memref<5x32x128xf32, #tpu.memory_space<vmem>>, vector<1x32x128xf32>
    %107 = vector.shape_cast %106 : vector<1x32x128xf32> to vector<32x128xf32>
    %108 = arith.truncf %107 : vector<32x128xf32> to vector<32x128xbf16>
    %c3_80 = arith.constant 3 : index
    %c0_81 = arith.constant 0 : index
    %c0_82 = arith.constant 0 : index
    %109 = vector.load %arg2[%c3_80, %c0_81, %c0_82] : memref<5x128x64xbf16, #tpu.memory_space<vmem>>, vector<1x128x64xbf16>
    %110 = vector.shape_cast %109 : vector<1x128x64xbf16> to vector<128x64xbf16>
    %cst_83 = arith.constant dense<0.000000e+00> : vector<32x64xf32>
    %111 = tpu.matmul %108, %110, %cst_83 {dimension_numbers = #tpu.dot_dimension_numbers<[1], [0], [0], [1], [0, 0, 1, 1], [], []>} : vector<32x128xbf16>, vector<128x64xbf16>, vector<32x64xf32> -> vector<32x64xf32>
    %112 = arith.addf %105, %111 : vector<32x64xf32>
    %c4_84 = arith.constant 4 : index
    %c0_85 = arith.constant 0 : index
    %c0_86 = arith.constant 0 : index
    %113 = vector.load %arg9[%c4_84, %c0_85, %c0_86] : memref<5x32x128xf32, #tpu.memory_space<vmem>>, vector<1x32x128xf32>
    %114 = vector.shape_cast %113 : vector<1x32x128xf32> to vector<32x128xf32>
    %115 = arith.truncf %114 : vector<32x128xf32> to vector<32x128xbf16>
    %c4_87 = arith.constant 4 : index
    %c0_88 = arith.constant 0 : index
    %c0_89 = arith.constant 0 : index
    %116 = vector.load %arg2[%c4_87, %c0_88, %c0_89] : memref<5x128x64xbf16, #tpu.memory_space<vmem>>, vector<1x128x64xbf16>
    %117 = vector.shape_cast %116 : vector<1x128x64xbf16> to vector<128x64xbf16>
    %cst_90 = arith.constant dense<0.000000e+00> : vector<32x64xf32>
    %118 = tpu.matmul %115, %117, %cst_90 {dimension_numbers = #tpu.dot_dimension_numbers<[1], [0], [0], [1], [0, 0, 1, 1], [], []>} : vector<32x128xbf16>, vector<128x64xbf16>, vector<32x64xf32> -> vector<32x64xf32>
    %119 = arith.addf %112, %118 : vector<32x64xf32>
    %c0_91 = arith.constant 0 : index
    %c0_92 = arith.constant 0 : index
    %120 = vector.load %arg3[%c0_91, %c0_92] : memref<1x64xf32, #tpu.memory_space<vmem>>, vector<1x64xf32>
    %121 = vector.broadcast %120 : vector<1x64xf32> to vector<32x64xf32>
    %122 = arith.addf %119, %121 : vector<32x64xf32>
    %cst_93 = arith.constant 0.000000e+00 : f32
    %123 = vector.broadcast %cst_93 : f32 to vector<32x64xf32>
    %124 = arith.maximumf %122, %123 : vector<32x64xf32>
    %125 = vector.extract_strided_slice %124 {offsets = [0, 0], sizes = [16, 64], strides = [1, 1]} : vector<32x64xf32> to vector<16x64xf32>
    %cst_94 = arith.constant 0.000000e+00 : f32
    %126 = vector.broadcast %cst_94 : f32 to vector<2x64xf32>
    %c0_95 = arith.constant 0 : index
    %c0_96 = arith.constant 0 : index
    %c0_97 = arith.constant 0 : index
    %127 = vector.load %arg10[%c0_95, %c0_96, %c0_97] : memref<5x32x64xf32, #tpu.memory_space<vmem>>, vector<1x2x64xf32>
    %128 = vector.shape_cast %127 : vector<1x2x64xf32> to vector<2x64xf32>
    %129 = vector.shape_cast %126 : vector<2x64xf32> to vector<1x2x64xf32>
    tpu.vector_store %arg10[%c0_95, %c0_96, %c0_97], %129 {strides = array<i32>} : memref<5x32x64xf32, #tpu.memory_space<vmem>>, vector<1x2x64xf32>,
    %130 = vector.extract_strided_slice %125 {offsets = [0, 0], sizes = [14, 64], strides = [1, 1]} : vector<16x64xf32> to vector<14x64xf32>
    %c0_98 = arith.constant 0 : index
    %c2_99 = arith.constant 2 : index
    %c0_100 = arith.constant 0 : index
    %131 = vector.load %arg10[%c0_98, %c2_99, %c0_100] : memref<5x32x64xf32, #tpu.memory_space<vmem>>, vector<1x14x64xf32>
    %132 = vector.shape_cast %131 : vector<1x14x64xf32> to vector<14x64xf32>
    %133 = vector.shape_cast %130 : vector<14x64xf32> to vector<1x14x64xf32>
    tpu.vector_store %arg10[%c0_98, %c2_99, %c0_100], %133 {strides = array<i32>} : memref<5x32x64xf32, #tpu.memory_space<vmem>>, vector<1x14x64xf32>,
    %cst_101 = arith.constant 0.000000e+00 : f32
    %134 = vector.broadcast %cst_101 : f32 to vector<1x64xf32>
    %c1_102 = arith.constant 1 : index
    %c0_103 = arith.constant 0 : index
    %c0_104 = arith.constant 0 : index
    %135 = vector.load %arg10[%c1_102, %c0_103, %c0_104] : memref<5x32x64xf32, #tpu.memory_space<vmem>>, vector<1x1x64xf32>
    %136 = vector.shape_cast %135 : vector<1x1x64xf32> to vector<1x64xf32>
    %137 = vector.shape_cast %134 : vector<1x64xf32> to vector<1x1x64xf32>
    tpu.vector_store %arg10[%c1_102, %c0_103, %c0_104], %137 {strides = array<i32>} : memref<5x32x64xf32, #tpu.memory_space<vmem>>, vector<1x1x64xf32>,
    %138 = vector.extract_strided_slice %125 {offsets = [0, 0], sizes = [15, 64], strides = [1, 1]} : vector<16x64xf32> to vector<15x64xf32>
    %c1_105 = arith.constant 1 : index
    %c1_106 = arith.constant 1 : index
    %c0_107 = arith.constant 0 : index
    %139 = vector.load %arg10[%c1_105, %c1_106, %c0_107] : memref<5x32x64xf32, #tpu.memory_space<vmem>>, vector<1x15x64xf32>
    %140 = vector.shape_cast %139 : vector<1x15x64xf32> to vector<15x64xf32>
    %141 = vector.shape_cast %138 : vector<15x64xf32> to vector<1x15x64xf32>
    tpu.vector_store %arg10[%c1_105, %c1_106, %c0_107], %141 {strides = array<i32>} : memref<5x32x64xf32, #tpu.memory_space<vmem>>, vector<1x15x64xf32>,
    %c2_108 = arith.constant 2 : index
    %c0_109 = arith.constant 0 : index
    %c0_110 = arith.constant 0 : index
    %142 = vector.load %arg10[%c2_108, %c0_109, %c0_110] : memref<5x32x64xf32, #tpu.memory_space<vmem>>, vector<1x16x64xf32>
    %143 = vector.shape_cast %142 : vector<1x16x64xf32> to vector<16x64xf32>
    %144 = vector.shape_cast %125 : vector<16x64xf32> to vector<1x16x64xf32>
    tpu.vector_store %arg10[%c2_108, %c0_109, %c0_110], %144 {strides = array<i32>} : memref<5x32x64xf32, #tpu.memory_space<vmem>>, vector<1x16x64xf32>,
    %145 = vector.extract_strided_slice %125 {offsets = [1, 0], sizes = [15, 64], strides = [1, 1]} : vector<16x64xf32> to vector<15x64xf32>
    %c3_111 = arith.constant 3 : index
    %c0_112 = arith.constant 0 : index
    %c0_113 = arith.constant 0 : index
    %146 = vector.load %arg10[%c3_111, %c0_112, %c0_113] : memref<5x32x64xf32, #tpu.memory_space<vmem>>, vector<1x15x64xf32>
    %147 = vector.shape_cast %146 : vector<1x15x64xf32> to vector<15x64xf32>
    %148 = vector.shape_cast %145 : vector<15x64xf32> to vector<1x15x64xf32>
    tpu.vector_store %arg10[%c3_111, %c0_112, %c0_113], %148 {strides = array<i32>} : memref<5x32x64xf32, #tpu.memory_space<vmem>>, vector<1x15x64xf32>,
    %cst_114 = arith.constant 0.000000e+00 : f32
    %149 = vector.broadcast %cst_114 : f32 to vector<1x64xf32>
    %c3_115 = arith.constant 3 : index
    %c15_116 = arith.constant 15 : index
    %c0_117 = arith.constant 0 : index
    %150 = vector.load %arg10[%c3_115, %c15_116, %c0_117] : memref<5x32x64xf32, #tpu.memory_space<vmem>>, vector<1x1x64xf32>
    %151 = vector.shape_cast %150 : vector<1x1x64xf32> to vector<1x64xf32>
    %152 = vector.shape_cast %149 : vector<1x64xf32> to vector<1x1x64xf32>
    tpu.vector_store %arg10[%c3_115, %c15_116, %c0_117], %152 {strides = array<i32>} : memref<5x32x64xf32, #tpu.memory_space<vmem>>, vector<1x1x64xf32>,
    %153 = vector.extract_strided_slice %125 {offsets = [2, 0], sizes = [14, 64], strides = [1, 1]} : vector<16x64xf32> to vector<14x64xf32>
    %c4_118 = arith.constant 4 : index
    %c0_119 = arith.constant 0 : index
    %c0_120 = arith.constant 0 : index
    %154 = vector.load %arg10[%c4_118, %c0_119, %c0_120] : memref<5x32x64xf32, #tpu.memory_space<vmem>>, vector<1x14x64xf32>
    %155 = vector.shape_cast %154 : vector<1x14x64xf32> to vector<14x64xf32>
    %156 = vector.shape_cast %153 : vector<14x64xf32> to vector<1x14x64xf32>
    tpu.vector_store %arg10[%c4_118, %c0_119, %c0_120], %156 {strides = array<i32>} : memref<5x32x64xf32, #tpu.memory_space<vmem>>, vector<1x14x64xf32>,
    %cst_121 = arith.constant 0.000000e+00 : f32
    %157 = vector.broadcast %cst_121 : f32 to vector<2x64xf32>
    %c4_122 = arith.constant 4 : index
    %c14_123 = arith.constant 14 : index
    %c0_124 = arith.constant 0 : index
    %158 = vector.load %arg10[%c4_122, %c14_123, %c0_124] : memref<5x32x64xf32, #tpu.memory_space<vmem>>, vector<1x2x64xf32>
    %159 = vector.shape_cast %158 : vector<1x2x64xf32> to vector<2x64xf32>
    %160 = vector.shape_cast %157 : vector<2x64xf32> to vector<1x2x64xf32>
    tpu.vector_store %arg10[%c4_122, %c14_123, %c0_124], %160 {strides = array<i32>} : memref<5x32x64xf32, #tpu.memory_space<vmem>>, vector<1x2x64xf32>,
    %161 = vector.extract_strided_slice %124 {offsets = [16, 0], sizes = [16, 64], strides = [1, 1]} : vector<32x64xf32> to vector<16x64xf32>
    %cst_125 = arith.constant 0.000000e+00 : f32
    %162 = vector.broadcast %cst_125 : f32 to vector<2x64xf32>
    %c0_126 = arith.constant 0 : index
    %c16_127 = arith.constant 16 : index
    %c0_128 = arith.constant 0 : index
    %163 = vector.load %arg10[%c0_126, %c16_127, %c0_128] : memref<5x32x64xf32, #tpu.memory_space<vmem>>, vector<1x2x64xf32>
    %164 = vector.shape_cast %163 : vector<1x2x64xf32> to vector<2x64xf32>
    %165 = vector.shape_cast %162 : vector<2x64xf32> to vector<1x2x64xf32>
    tpu.vector_store %arg10[%c0_126, %c16_127, %c0_128], %165 {strides = array<i32>} : memref<5x32x64xf32, #tpu.memory_space<vmem>>, vector<1x2x64xf32>,
    %166 = vector.extract_strided_slice %161 {offsets = [0, 0], sizes = [14, 64], strides = [1, 1]} : vector<16x64xf32> to vector<14x64xf32>
    %c0_129 = arith.constant 0 : index
    %c18_130 = arith.constant 18 : index
    %c0_131 = arith.constant 0 : index
    %167 = vector.load %arg10[%c0_129, %c18_130, %c0_131] : memref<5x32x64xf32, #tpu.memory_space<vmem>>, vector<1x14x64xf32>
    %168 = vector.shape_cast %167 : vector<1x14x64xf32> to vector<14x64xf32>
    %169 = vector.shape_cast %166 : vector<14x64xf32> to vector<1x14x64xf32>
    tpu.vector_store %arg10[%c0_129, %c18_130, %c0_131], %169 {strides = array<i32>} : memref<5x32x64xf32, #tpu.memory_space<vmem>>, vector<1x14x64xf32>,
    %cst_132 = arith.constant 0.000000e+00 : f32
    %170 = vector.broadcast %cst_132 : f32 to vector<1x64xf32>
    %c1_133 = arith.constant 1 : index
    %c16_134 = arith.constant 16 : index
    %c0_135 = arith.constant 0 : index
    %171 = vector.load %arg10[%c1_133, %c16_134, %c0_135] : memref<5x32x64xf32, #tpu.memory_space<vmem>>, vector<1x1x64xf32>
    %172 = vector.shape_cast %171 : vector<1x1x64xf32> to vector<1x64xf32>
    %173 = vector.shape_cast %170 : vector<1x64xf32> to vector<1x1x64xf32>
    tpu.vector_store %arg10[%c1_133, %c16_134, %c0_135], %173 {strides = array<i32>} : memref<5x32x64xf32, #tpu.memory_space<vmem>>, vector<1x1x64xf32>,
    %174 = vector.extract_strided_slice %161 {offsets = [0, 0], sizes = [15, 64], strides = [1, 1]} : vector<16x64xf32> to vector<15x64xf32>
    %c1_136 = arith.constant 1 : index
    %c17_137 = arith.constant 17 : index
    %c0_138 = arith.constant 0 : index
    %175 = vector.load %arg10[%c1_136, %c17_137, %c0_138] : memref<5x32x64xf32, #tpu.memory_space<vmem>>, vector<1x15x64xf32>
    %176 = vector.shape_cast %175 : vector<1x15x64xf32> to vector<15x64xf32>
    %177 = vector.shape_cast %174 : vector<15x64xf32> to vector<1x15x64xf32>
    tpu.vector_store %arg10[%c1_136, %c17_137, %c0_138], %177 {strides = array<i32>} : memref<5x32x64xf32, #tpu.memory_space<vmem>>, vector<1x15x64xf32>,
    %c2_139 = arith.constant 2 : index
    %c16_140 = arith.constant 16 : index
    %c0_141 = arith.constant 0 : index
    %178 = vector.load %arg10[%c2_139, %c16_140, %c0_141] : memref<5x32x64xf32, #tpu.memory_space<vmem>>, vector<1x16x64xf32>
    %179 = vector.shape_cast %178 : vector<1x16x64xf32> to vector<16x64xf32>
    %180 = vector.shape_cast %161 : vector<16x64xf32> to vector<1x16x64xf32>
    tpu.vector_store %arg10[%c2_139, %c16_140, %c0_141], %180 {strides = array<i32>} : memref<5x32x64xf32, #tpu.memory_space<vmem>>, vector<1x16x64xf32>,
    %181 = vector.extract_strided_slice %161 {offsets = [1, 0], sizes = [15, 64], strides = [1, 1]} : vector<16x64xf32> to vector<15x64xf32>
    %c3_142 = arith.constant 3 : index
    %c16_143 = arith.constant 16 : index
    %c0_144 = arith.constant 0 : index
    %182 = vector.load %arg10[%c3_142, %c16_143, %c0_144] : memref<5x32x64xf32, #tpu.memory_space<vmem>>, vector<1x15x64xf32>
    %183 = vector.shape_cast %182 : vector<1x15x64xf32> to vector<15x64xf32>
    %184 = vector.shape_cast %181 : vector<15x64xf32> to vector<1x15x64xf32>
    tpu.vector_store %arg10[%c3_142, %c16_143, %c0_144], %184 {strides = array<i32>} : memref<5x32x64xf32, #tpu.memory_space<vmem>>, vector<1x15x64xf32>,
    %cst_145 = arith.constant 0.000000e+00 : f32
    %185 = vector.broadcast %cst_145 : f32 to vector<1x64xf32>
    %c3_146 = arith.constant 3 : index
    %c31_147 = arith.constant 31 : index
    %c0_148 = arith.constant 0 : index
    %186 = vector.load %arg10[%c3_146, %c31_147, %c0_148] : memref<5x32x64xf32, #tpu.memory_space<vmem>>, vector<1x1x64xf32>
    %187 = vector.shape_cast %186 : vector<1x1x64xf32> to vector<1x64xf32>
    %188 = vector.shape_cast %185 : vector<1x64xf32> to vector<1x1x64xf32>
    tpu.vector_store %arg10[%c3_146, %c31_147, %c0_148], %188 {strides = array<i32>} : memref<5x32x64xf32, #tpu.memory_space<vmem>>, vector<1x1x64xf32>,
    %189 = vector.extract_strided_slice %161 {offsets = [2, 0], sizes = [14, 64], strides = [1, 1]} : vector<16x64xf32> to vector<14x64xf32>
    %c4_149 = arith.constant 4 : index
    %c16_150 = arith.constant 16 : index
    %c0_151 = arith.constant 0 : index
    %190 = vector.load %arg10[%c4_149, %c16_150, %c0_151] : memref<5x32x64xf32, #tpu.memory_space<vmem>>, vector<1x14x64xf32>
    %191 = vector.shape_cast %190 : vector<1x14x64xf32> to vector<14x64xf32>
    %192 = vector.shape_cast %189 : vector<14x64xf32> to vector<1x14x64xf32>
    tpu.vector_store %arg10[%c4_149, %c16_150, %c0_151], %192 {strides = array<i32>} : memref<5x32x64xf32, #tpu.memory_space<vmem>>, vector<1x14x64xf32>,
    %cst_152 = arith.constant 0.000000e+00 : f32
    %193 = vector.broadcast %cst_152 : f32 to vector<2x64xf32>
    %c4_153 = arith.constant 4 : index
    %c30_154 = arith.constant 30 : index
    %c0_155 = arith.constant 0 : index
    %194 = vector.load %arg10[%c4_153, %c30_154, %c0_155] : memref<5x32x64xf32, #tpu.memory_space<vmem>>, vector<1x2x64xf32>
    %195 = vector.shape_cast %194 : vector<1x2x64xf32> to vector<2x64xf32>
    %196 = vector.shape_cast %193 : vector<2x64xf32> to vector<1x2x64xf32>
    tpu.vector_store %arg10[%c4_153, %c30_154, %c0_155], %196 {strides = array<i32>} : memref<5x32x64xf32, #tpu.memory_space<vmem>>, vector<1x2x64xf32>,
    %cst_156 = arith.constant 0.000000e+00 : f32
    %197 = vector.broadcast %cst_156 : f32 to vector<32x64xf32>
    %c0_157 = arith.constant 0 : index
    %c0_158 = arith.constant 0 : index
    %c0_159 = arith.constant 0 : index
    %198 = vector.load %arg10[%c0_157, %c0_158, %c0_159] : memref<5x32x64xf32, #tpu.memory_space<vmem>>, vector<1x32x64xf32>
    %199 = vector.shape_cast %198 : vector<1x32x64xf32> to vector<32x64xf32>
    %200 = arith.truncf %199 : vector<32x64xf32> to vector<32x64xbf16>
    %c0_160 = arith.constant 0 : index
    %c0_161 = arith.constant 0 : index
    %c0_162 = arith.constant 0 : index
    %201 = vector.load %arg4[%c0_160, %c0_161, %c0_162] : memref<5x64x64xbf16, #tpu.memory_space<vmem>>, vector<1x64x64xbf16>
    %202 = vector.shape_cast %201 : vector<1x64x64xbf16> to vector<64x64xbf16>
    %cst_163 = arith.constant dense<0.000000e+00> : vector<32x64xf32>
    %203 = tpu.matmul %200, %202, %cst_163 {dimension_numbers = #tpu.dot_dimension_numbers<[1], [0], [0], [1], [0, 0, 1, 1], [], []>} : vector<32x64xbf16>, vector<64x64xbf16>, vector<32x64xf32> -> vector<32x64xf32>
    %204 = arith.addf %197, %203 : vector<32x64xf32>
    %c1_164 = arith.constant 1 : index
    %c0_165 = arith.constant 0 : index
    %c0_166 = arith.constant 0 : index
    %205 = vector.load %arg10[%c1_164, %c0_165, %c0_166] : memref<5x32x64xf32, #tpu.memory_space<vmem>>, vector<1x32x64xf32>
    %206 = vector.shape_cast %205 : vector<1x32x64xf32> to vector<32x64xf32>
    %207 = arith.truncf %206 : vector<32x64xf32> to vector<32x64xbf16>
    %c1_167 = arith.constant 1 : index
    %c0_168 = arith.constant 0 : index
    %c0_169 = arith.constant 0 : index
    %208 = vector.load %arg4[%c1_167, %c0_168, %c0_169] : memref<5x64x64xbf16, #tpu.memory_space<vmem>>, vector<1x64x64xbf16>
    %209 = vector.shape_cast %208 : vector<1x64x64xbf16> to vector<64x64xbf16>
    %cst_170 = arith.constant dense<0.000000e+00> : vector<32x64xf32>
    %210 = tpu.matmul %207, %209, %cst_170 {dimension_numbers = #tpu.dot_dimension_numbers<[1], [0], [0], [1], [0, 0, 1, 1], [], []>} : vector<32x64xbf16>, vector<64x64xbf16>, vector<32x64xf32> -> vector<32x64xf32>
    %211 = arith.addf %204, %210 : vector<32x64xf32>
    %c2_171 = arith.constant 2 : index
    %c0_172 = arith.constant 0 : index
    %c0_173 = arith.constant 0 : index
    %212 = vector.load %arg10[%c2_171, %c0_172, %c0_173] : memref<5x32x64xf32, #tpu.memory_space<vmem>>, vector<1x32x64xf32>
    %213 = vector.shape_cast %212 : vector<1x32x64xf32> to vector<32x64xf32>
    %214 = arith.truncf %213 : vector<32x64xf32> to vector<32x64xbf16>
    %c2_174 = arith.constant 2 : index
    %c0_175 = arith.constant 0 : index
    %c0_176 = arith.constant 0 : index
    %215 = vector.load %arg4[%c2_174, %c0_175, %c0_176] : memref<5x64x64xbf16, #tpu.memory_space<vmem>>, vector<1x64x64xbf16>
    %216 = vector.shape_cast %215 : vector<1x64x64xbf16> to vector<64x64xbf16>
    %cst_177 = arith.constant dense<0.000000e+00> : vector<32x64xf32>
    %217 = tpu.matmul %214, %216, %cst_177 {dimension_numbers = #tpu.dot_dimension_numbers<[1], [0], [0], [1], [0, 0, 1, 1], [], []>} : vector<32x64xbf16>, vector<64x64xbf16>, vector<32x64xf32> -> vector<32x64xf32>
    %218 = arith.addf %211, %217 : vector<32x64xf32>
    %c3_178 = arith.constant 3 : index
    %c0_179 = arith.constant 0 : index
    %c0_180 = arith.constant 0 : index
    %219 = vector.load %arg10[%c3_178, %c0_179, %c0_180] : memref<5x32x64xf32, #tpu.memory_space<vmem>>, vector<1x32x64xf32>
    %220 = vector.shape_cast %219 : vector<1x32x64xf32> to vector<32x64xf32>
    %221 = arith.truncf %220 : vector<32x64xf32> to vector<32x64xbf16>
    %c3_181 = arith.constant 3 : index
    %c0_182 = arith.constant 0 : index
    %c0_183 = arith.constant 0 : index
    %222 = vector.load %arg4[%c3_181, %c0_182, %c0_183] : memref<5x64x64xbf16, #tpu.memory_space<vmem>>, vector<1x64x64xbf16>
    %223 = vector.shape_cast %222 : vector<1x64x64xbf16> to vector<64x64xbf16>
    %cst_184 = arith.constant dense<0.000000e+00> : vector<32x64xf32>
    %224 = tpu.matmul %221, %223, %cst_184 {dimension_numbers = #tpu.dot_dimension_numbers<[1], [0], [0], [1], [0, 0, 1, 1], [], []>} : vector<32x64xbf16>, vector<64x64xbf16>, vector<32x64xf32> -> vector<32x64xf32>
    %225 = arith.addf %218, %224 : vector<32x64xf32>
    %c4_185 = arith.constant 4 : index
    %c0_186 = arith.constant 0 : index
    %c0_187 = arith.constant 0 : index
    %226 = vector.load %arg10[%c4_185, %c0_186, %c0_187] : memref<5x32x64xf32, #tpu.memory_space<vmem>>, vector<1x32x64xf32>
    %227 = vector.shape_cast %226 : vector<1x32x64xf32> to vector<32x64xf32>
    %228 = arith.truncf %227 : vector<32x64xf32> to vector<32x64xbf16>
    %c4_188 = arith.constant 4 : index
    %c0_189 = arith.constant 0 : index
    %c0_190 = arith.constant 0 : index
    %229 = vector.load %arg4[%c4_188, %c0_189, %c0_190] : memref<5x64x64xbf16, #tpu.memory_space<vmem>>, vector<1x64x64xbf16>
    %230 = vector.shape_cast %229 : vector<1x64x64xbf16> to vector<64x64xbf16>
    %cst_191 = arith.constant dense<0.000000e+00> : vector<32x64xf32>
    %231 = tpu.matmul %228, %230, %cst_191 {dimension_numbers = #tpu.dot_dimension_numbers<[1], [0], [0], [1], [0, 0, 1, 1], [], []>} : vector<32x64xbf16>, vector<64x64xbf16>, vector<32x64xf32> -> vector<32x64xf32>
    %232 = arith.addf %225, %231 : vector<32x64xf32>
    %c0_192 = arith.constant 0 : index
    %c0_193 = arith.constant 0 : index
    %233 = vector.load %arg5[%c0_192, %c0_193] : memref<1x64xf32, #tpu.memory_space<vmem>>, vector<1x64xf32>
    %234 = vector.broadcast %233 : vector<1x64xf32> to vector<32x64xf32>
    %235 = arith.addf %232, %234 : vector<32x64xf32>
    %cst_194 = arith.constant 0.000000e+00 : f32
    %236 = vector.broadcast %cst_194 : f32 to vector<32x64xf32>
    %237 = arith.maximumf %235, %236 : vector<32x64xf32>
    %238 = vector.extract_strided_slice %237 {offsets = [0, 0], sizes = [16, 64], strides = [1, 1]} : vector<32x64xf32> to vector<16x64xf32>
    %cst_195 = arith.constant 0.000000e+00 : f32
    %239 = vector.broadcast %cst_195 : f32 to vector<1x64xf32>
    %c0_196 = arith.constant 0 : index
    %c0_197 = arith.constant 0 : index
    %c0_198 = arith.constant 0 : index
    %240 = vector.load %arg11[%c0_196, %c0_197, %c0_198] : memref<3x32x64xf32, #tpu.memory_space<vmem>>, vector<1x1x64xf32>
    %241 = vector.shape_cast %240 : vector<1x1x64xf32> to vector<1x64xf32>
    %242 = vector.shape_cast %239 : vector<1x64xf32> to vector<1x1x64xf32>
    tpu.vector_store %arg11[%c0_196, %c0_197, %c0_198], %242 {strides = array<i32>} : memref<3x32x64xf32, #tpu.memory_space<vmem>>, vector<1x1x64xf32>,
    %243 = vector.extract_strided_slice %238 {offsets = [0, 0], sizes = [15, 64], strides = [1, 1]} : vector<16x64xf32> to vector<15x64xf32>
    %c0_199 = arith.constant 0 : index
    %c1_200 = arith.constant 1 : index
    %c0_201 = arith.constant 0 : index
    %244 = vector.load %arg11[%c0_199, %c1_200, %c0_201] : memref<3x32x64xf32, #tpu.memory_space<vmem>>, vector<1x15x64xf32>
    %245 = vector.shape_cast %244 : vector<1x15x64xf32> to vector<15x64xf32>
    %246 = vector.shape_cast %243 : vector<15x64xf32> to vector<1x15x64xf32>
    tpu.vector_store %arg11[%c0_199, %c1_200, %c0_201], %246 {strides = array<i32>} : memref<3x32x64xf32, #tpu.memory_space<vmem>>, vector<1x15x64xf32>,
    %c1_202 = arith.constant 1 : index
    %c0_203 = arith.constant 0 : index
    %c0_204 = arith.constant 0 : index
    %247 = vector.load %arg11[%c1_202, %c0_203, %c0_204] : memref<3x32x64xf32, #tpu.memory_space<vmem>>, vector<1x16x64xf32>
    %248 = vector.shape_cast %247 : vector<1x16x64xf32> to vector<16x64xf32>
    %249 = vector.shape_cast %238 : vector<16x64xf32> to vector<1x16x64xf32>
    tpu.vector_store %arg11[%c1_202, %c0_203, %c0_204], %249 {strides = array<i32>} : memref<3x32x64xf32, #tpu.memory_space<vmem>>, vector<1x16x64xf32>,
    %250 = vector.extract_strided_slice %238 {offsets = [1, 0], sizes = [15, 64], strides = [1, 1]} : vector<16x64xf32> to vector<15x64xf32>
    %c2_205 = arith.constant 2 : index
    %c0_206 = arith.constant 0 : index
    %c0_207 = arith.constant 0 : index
    %251 = vector.load %arg11[%c2_205, %c0_206, %c0_207] : memref<3x32x64xf32, #tpu.memory_space<vmem>>, vector<1x15x64xf32>
    %252 = vector.shape_cast %251 : vector<1x15x64xf32> to vector<15x64xf32>
    %253 = vector.shape_cast %250 : vector<15x64xf32> to vector<1x15x64xf32>
    tpu.vector_store %arg11[%c2_205, %c0_206, %c0_207], %253 {strides = array<i32>} : memref<3x32x64xf32, #tpu.memory_space<vmem>>, vector<1x15x64xf32>,
    %cst_208 = arith.constant 0.000000e+00 : f32
    %254 = vector.broadcast %cst_208 : f32 to vector<1x64xf32>
    %c2_209 = arith.constant 2 : index
    %c15_210 = arith.constant 15 : index
    %c0_211 = arith.constant 0 : index
    %255 = vector.load %arg11[%c2_209, %c15_210, %c0_211] : memref<3x32x64xf32, #tpu.memory_space<vmem>>, vector<1x1x64xf32>
    %256 = vector.shape_cast %255 : vector<1x1x64xf32> to vector<1x64xf32>
    %257 = vector.shape_cast %254 : vector<1x64xf32> to vector<1x1x64xf32>
    tpu.vector_store %arg11[%c2_209, %c15_210, %c0_211], %257 {strides = array<i32>} : memref<3x32x64xf32, #tpu.memory_space<vmem>>, vector<1x1x64xf32>,
    %258 = vector.extract_strided_slice %237 {offsets = [16, 0], sizes = [16, 64], strides = [1, 1]} : vector<32x64xf32> to vector<16x64xf32>
    %cst_212 = arith.constant 0.000000e+00 : f32
    %259 = vector.broadcast %cst_212 : f32 to vector<1x64xf32>
    %c0_213 = arith.constant 0 : index
    %c16_214 = arith.constant 16 : index
    %c0_215 = arith.constant 0 : index
    %260 = vector.load %arg11[%c0_213, %c16_214, %c0_215] : memref<3x32x64xf32, #tpu.memory_space<vmem>>, vector<1x1x64xf32>
    %261 = vector.shape_cast %260 : vector<1x1x64xf32> to vector<1x64xf32>
    %262 = vector.shape_cast %259 : vector<1x64xf32> to vector<1x1x64xf32>
    tpu.vector_store %arg11[%c0_213, %c16_214, %c0_215], %262 {strides = array<i32>} : memref<3x32x64xf32, #tpu.memory_space<vmem>>, vector<1x1x64xf32>,
    %263 = vector.extract_strided_slice %258 {offsets = [0, 0], sizes = [15, 64], strides = [1, 1]} : vector<16x64xf32> to vector<15x64xf32>
    %c0_216 = arith.constant 0 : index
    %c17_217 = arith.constant 17 : index
    %c0_218 = arith.constant 0 : index
    %264 = vector.load %arg11[%c0_216, %c17_217, %c0_218] : memref<3x32x64xf32, #tpu.memory_space<vmem>>, vector<1x15x64xf32>
    %265 = vector.shape_cast %264 : vector<1x15x64xf32> to vector<15x64xf32>
    %266 = vector.shape_cast %263 : vector<15x64xf32> to vector<1x15x64xf32>
    tpu.vector_store %arg11[%c0_216, %c17_217, %c0_218], %266 {strides = array<i32>} : memref<3x32x64xf32, #tpu.memory_space<vmem>>, vector<1x15x64xf32>,
    %c1_219 = arith.constant 1 : index
    %c16_220 = arith.constant 16 : index
    %c0_221 = arith.constant 0 : index
    %267 = vector.load %arg11[%c1_219, %c16_220, %c0_221] : memref<3x32x64xf32, #tpu.memory_space<vmem>>, vector<1x16x64xf32>
    %268 = vector.shape_cast %267 : vector<1x16x64xf32> to vector<16x64xf32>
    %269 = vector.shape_cast %258 : vector<16x64xf32> to vector<1x16x64xf32>
    tpu.vector_store %arg11[%c1_219, %c16_220, %c0_221], %269 {strides = array<i32>} : memref<3x32x64xf32, #tpu.memory_space<vmem>>, vector<1x16x64xf32>,
    %270 = vector.extract_strided_slice %258 {offsets = [1, 0], sizes = [15, 64], strides = [1, 1]} : vector<16x64xf32> to vector<15x64xf32>
    %c2_222 = arith.constant 2 : index
    %c16_223 = arith.constant 16 : index
    %c0_224 = arith.constant 0 : index
    %271 = vector.load %arg11[%c2_222, %c16_223, %c0_224] : memref<3x32x64xf32, #tpu.memory_space<vmem>>, vector<1x15x64xf32>
    %272 = vector.shape_cast %271 : vector<1x15x64xf32> to vector<15x64xf32>
    %273 = vector.shape_cast %270 : vector<15x64xf32> to vector<1x15x64xf32>
    tpu.vector_store %arg11[%c2_222, %c16_223, %c0_224], %273 {strides = array<i32>} : memref<3x32x64xf32, #tpu.memory_space<vmem>>, vector<1x15x64xf32>,
    %cst_225 = arith.constant 0.000000e+00 : f32
    %274 = vector.broadcast %cst_225 : f32 to vector<1x64xf32>
    %c2_226 = arith.constant 2 : index
    %c31_227 = arith.constant 31 : index
    %c0_228 = arith.constant 0 : index
    %275 = vector.load %arg11[%c2_226, %c31_227, %c0_228] : memref<3x32x64xf32, #tpu.memory_space<vmem>>, vector<1x1x64xf32>
    %276 = vector.shape_cast %275 : vector<1x1x64xf32> to vector<1x64xf32>
    %277 = vector.shape_cast %274 : vector<1x64xf32> to vector<1x1x64xf32>
    tpu.vector_store %arg11[%c2_226, %c31_227, %c0_228], %277 {strides = array<i32>} : memref<3x32x64xf32, #tpu.memory_space<vmem>>, vector<1x1x64xf32>,
    %cst_229 = arith.constant 0.000000e+00 : f32
    %278 = vector.broadcast %cst_229 : f32 to vector<32x256xf32>
    %c0_230 = arith.constant 0 : index
    %c0_231 = arith.constant 0 : index
    %c0_232 = arith.constant 0 : index
    %279 = vector.load %arg11[%c0_230, %c0_231, %c0_232] : memref<3x32x64xf32, #tpu.memory_space<vmem>>, vector<1x32x64xf32>
    %280 = vector.shape_cast %279 : vector<1x32x64xf32> to vector<32x64xf32>
    %281 = arith.truncf %280 : vector<32x64xf32> to vector<32x64xbf16>
    %c0_233 = arith.constant 0 : index
    %c0_234 = arith.constant 0 : index
    %c0_235 = arith.constant 0 : index
    %282 = vector.load %arg6[%c0_233, %c0_234, %c0_235] : memref<3x64x256xbf16, #tpu.memory_space<vmem>>, vector<1x64x256xbf16>
    %283 = vector.shape_cast %282 : vector<1x64x256xbf16> to vector<64x256xbf16>
    %cst_236 = arith.constant dense<0.000000e+00> : vector<32x256xf32>
    %284 = tpu.matmul %281, %283, %cst_236 {dimension_numbers = #tpu.dot_dimension_numbers<[1], [0], [0], [1], [0, 0, 1, 1], [], []>} : vector<32x64xbf16>, vector<64x256xbf16>, vector<32x256xf32> -> vector<32x256xf32>
    %285 = arith.addf %278, %284 : vector<32x256xf32>
    %c1_237 = arith.constant 1 : index
    %c0_238 = arith.constant 0 : index
    %c0_239 = arith.constant 0 : index
    %286 = vector.load %arg11[%c1_237, %c0_238, %c0_239] : memref<3x32x64xf32, #tpu.memory_space<vmem>>, vector<1x32x64xf32>
    %287 = vector.shape_cast %286 : vector<1x32x64xf32> to vector<32x64xf32>
    %288 = arith.truncf %287 : vector<32x64xf32> to vector<32x64xbf16>
    %c1_240 = arith.constant 1 : index
    %c0_241 = arith.constant 0 : index
    %c0_242 = arith.constant 0 : index
    %289 = vector.load %arg6[%c1_240, %c0_241, %c0_242] : memref<3x64x256xbf16, #tpu.memory_space<vmem>>, vector<1x64x256xbf16>
    %290 = vector.shape_cast %289 : vector<1x64x256xbf16> to vector<64x256xbf16>
    %cst_243 = arith.constant dense<0.000000e+00> : vector<32x256xf32>
    %291 = tpu.matmul %288, %290, %cst_243 {dimension_numbers = #tpu.dot_dimension_numbers<[1], [0], [0], [1], [0, 0, 1, 1], [], []>} : vector<32x64xbf16>, vector<64x256xbf16>, vector<32x256xf32> -> vector<32x256xf32>
    %292 = arith.addf %285, %291 : vector<32x256xf32>
    %c2_244 = arith.constant 2 : index
    %c0_245 = arith.constant 0 : index
    %c0_246 = arith.constant 0 : index
    %293 = vector.load %arg11[%c2_244, %c0_245, %c0_246] : memref<3x32x64xf32, #tpu.memory_space<vmem>>, vector<1x32x64xf32>
    %294 = vector.shape_cast %293 : vector<1x32x64xf32> to vector<32x64xf32>
    %295 = arith.truncf %294 : vector<32x64xf32> to vector<32x64xbf16>
    %c2_247 = arith.constant 2 : index
    %c0_248 = arith.constant 0 : index
    %c0_249 = arith.constant 0 : index
    %296 = vector.load %arg6[%c2_247, %c0_248, %c0_249] : memref<3x64x256xbf16, #tpu.memory_space<vmem>>, vector<1x64x256xbf16>
    %297 = vector.shape_cast %296 : vector<1x64x256xbf16> to vector<64x256xbf16>
    %cst_250 = arith.constant dense<0.000000e+00> : vector<32x256xf32>
    %298 = tpu.matmul %295, %297, %cst_250 {dimension_numbers = #tpu.dot_dimension_numbers<[1], [0], [0], [1], [0, 0, 1, 1], [], []>} : vector<32x64xbf16>, vector<64x256xbf16>, vector<32x256xf32> -> vector<32x256xf32>
    %299 = arith.addf %292, %298 : vector<32x256xf32>
    %c0_251 = arith.constant 0 : index
    %c0_252 = arith.constant 0 : index
    %300 = vector.load %arg7[%c0_251, %c0_252] : memref<1x256xf32, #tpu.memory_space<vmem>>, vector<1x256xf32>
    %301 = vector.broadcast %300 : vector<1x256xf32> to vector<32x256xf32>
    %302 = arith.addf %299, %301 : vector<32x256xf32>
    %303 = vector.extract_strided_slice %302 {offsets = [0, 0], sizes = [16, 256], strides = [1, 1]} : vector<32x256xf32> to vector<16x256xf32>
    %c0_253 = arith.constant 0 : index
    %c0_254 = arith.constant 0 : index
    %c0_255 = arith.constant 0 : index
    %304 = vector.load %arg8[%c0_253, %c0_254, %c0_255] : memref<2x16x256xf32, #tpu.memory_space<vmem>>, vector<1x16x256xf32>
    %305 = vector.shape_cast %304 : vector<1x16x256xf32> to vector<16x256xf32>
    %306 = vector.shape_cast %303 : vector<16x256xf32> to vector<1x16x256xf32>
    tpu.vector_store %arg8[%c0_253, %c0_254, %c0_255], %306 {strides = array<i32>} : memref<2x16x256xf32, #tpu.memory_space<vmem>>, vector<1x16x256xf32>,
    %307 = vector.extract_strided_slice %302 {offsets = [16, 0], sizes = [16, 256], strides = [1, 1]} : vector<32x256xf32> to vector<16x256xf32>
    %c1_256 = arith.constant 1 : index
    %c0_257 = arith.constant 0 : index
    %c0_258 = arith.constant 0 : index
    %308 = vector.load %arg8[%c1_256, %c0_257, %c0_258] : memref<2x16x256xf32, #tpu.memory_space<vmem>>, vector<1x16x256xf32>
    %309 = vector.shape_cast %308 : vector<1x16x256xf32> to vector<16x256xf32>
    %310 = vector.shape_cast %307 : vector<16x256xf32> to vector<1x16x256xf32>
    tpu.vector_store %arg8[%c1_256, %c0_257, %c0_258], %310 {strides = array<i32>} : memref<2x16x256xf32, #tpu.memory_space<vmem>>, vector<1x16x256xf32>,
    return
  }
  func.func @transform_0(%arg0: i32) -> (i32, i32, i32) {
    %c0_i32 = arith.constant 0 : i32
    %c0_i32_0 = arith.constant 0 : i32
    %c0_i32_1 = arith.constant 0 : i32
    return %arg0, %c0_i32, %c0_i32_0 : i32, i32, i32
  }
  func.func @transform_1(%arg0: i32) -> (i32, i32, i32) {
    %c0_i32 = arith.constant 0 : i32
    %c0_i32_0 = arith.constant 0 : i32
    %c0_i32_1 = arith.constant 0 : i32
    %c0_i32_2 = arith.constant 0 : i32
    return %c0_i32, %c0_i32_0, %c0_i32_1 : i32, i32, i32
  }
  func.func @transform_2(%arg0: i32) -> (i32, i32) {
    %c0_i32 = arith.constant 0 : i32
    %c0_i32_0 = arith.constant 0 : i32
    %c0_i32_1 = arith.constant 0 : i32
    return %c0_i32, %c0_i32_0 : i32, i32
  }
  func.func @transform_3(%arg0: i32) -> (i32, i32, i32) {
    %c0_i32 = arith.constant 0 : i32
    %c0_i32_0 = arith.constant 0 : i32
    %c0_i32_1 = arith.constant 0 : i32
    %c0_i32_2 = arith.constant 0 : i32
    return %c0_i32, %c0_i32_0, %c0_i32_1 : i32, i32, i32
  }
  func.func @transform_4(%arg0: i32) -> (i32, i32) {
    %c0_i32 = arith.constant 0 : i32
    %c0_i32_0 = arith.constant 0 : i32
    %c0_i32_1 = arith.constant 0 : i32
    return %c0_i32, %c0_i32_0 : i32, i32
  }
  func.func @transform_5(%arg0: i32) -> (i32, i32, i32) {
    %c0_i32 = arith.constant 0 : i32
    %c0_i32_0 = arith.constant 0 : i32
    %c0_i32_1 = arith.constant 0 : i32
    %c0_i32_2 = arith.constant 0 : i32
    return %c0_i32, %c0_i32_0, %c0_i32_1 : i32, i32, i32
  }
  func.func @transform_6(%arg0: i32) -> (i32, i32) {
    %c0_i32 = arith.constant 0 : i32
    %c0_i32_0 = arith.constant 0 : i32
    %c0_i32_1 = arith.constant 0 : i32
    return %c0_i32, %c0_i32_0 : i32, i32
  }
  func.func @transform_7(%arg0: i32) -> (i32, i32, i32) {
    %c0_i32 = arith.constant 0 : i32
    %c0_i32_0 = arith.constant 0 : i32
    %c0_i32_1 = arith.constant 0 : i32
    return %arg0, %c0_i32, %c0_i32_0 : i32, i32, i32
  }
}

</mosaic_0001>

<llo_original>
// kernel: _lambda_.1
$region0: #{_lambda_.1}
  #allocation0 [shape = 'u32[]', space=smem, size = 0x4, offset = 0x4, fixed_abs, tag = 'smem constant byte address 0x4 - core index']
  #allocation1 [shape = 'u32[144,128]{1,0:T(1,128)}', space=vmem, size = 0x12000, scoped, tag = 'internal scratch']
  #allocation2 [shape = 'f32[5,32,128]{2,1,0:T(8,128)}', space=vmem, size = 0x14000, scoped, tag = 'scratch operand']
  #allocation3 [shape = 'f32[5,32,64]{2,1,0:T(8,128)}', space=vmem, size = 0x14000, scoped, tag = 'scratch operand']
  #allocation4 [shape = 'f32[3,32,64]{2,1,0:T(8,128)}', space=vmem, size = 0xc000, scoped, tag = 'scratch operand']
  %s0 = inlined_call_operand.vmem [shape: bf16[2,16,128], index: 0, kind: input, shape index: {}]
  %s1 = inlined_call_operand.vmem [shape: bf16[5,128,64], index: 1, kind: input, shape index: {}]
  %s2 = inlined_call_operand.vmem [shape: f32[1,64], index: 2, kind: input, shape index: {}]
  %s3 = inlined_call_operand.vmem [shape: bf16[5,64,64], index: 3, kind: input, shape index: {}]
  %s4 = inlined_call_operand.vmem [shape: f32[1,64], index: 4, kind: input, shape index: {}]
  %s5 = inlined_call_operand.vmem [shape: bf16[3,64,256], index: 5, kind: input, shape index: {}]
  %s6 = inlined_call_operand.vmem [shape: f32[1,256], index: 6, kind: input, shape index: {}]
  %s7 = inlined_call_operand.vmem [shape: f32[2,16,256], index: 7, kind: output, shape index: {}]
  %s8 = sld [smem:[#allocation0]]
  $region38: #{_lambda_.1} parent=0
    _
  %s10 = ssub.s32 1, %s8
  %s11 = scalar_select 0, %s10, %s8
  // Predicated region
  $region2: #{_lambda_.1} parent=0 // pred_check
    _
  $region3: #{_lambda_.1} parent=0 // pred_check_branch
    %13 = sbr.rel (0) target = $region5
  $region4: #{_lambda_.1} parent=0 // pred_region
    _
  $region5: #{_lambda_.1} parent=0 // pred_fallthru
    _
  // Predicated region
  $region6: #{_lambda_.1} parent=0 // pred_check
    _
  $region7: #{_lambda_.1} parent=0 // pred_check_branch
    %15 = sbr.rel (0) target = $region9
  $region8: #{_lambda_.1} parent=0 // pred_region
    _
  $region9: #{_lambda_.1} parent=0 // pred_fallthru
    _
  // Predicated region
  $region10: #{_lambda_.1} parent=0 // pred_check
    _
  $region11: #{_lambda_.1} parent=0 // pred_check_branch
    %17 = sbr.rel (0) target = $region13
  $region12: #{_lambda_.1} parent=0 // pred_region
    _
  $region13: #{_lambda_.1} parent=0 // pred_fallthru
    _
  // Predicated region
  $region14: #{_lambda_.1} parent=0 // pred_check
    _
  $region15: #{_lambda_.1} parent=0 // pred_check_branch
    %19 = sbr.rel (0) target = $region17
  $region16: #{_lambda_.1} parent=0 // pred_region
    _
  $region17: #{_lambda_.1} parent=0 // pred_fallthru
    _
  // Predicated region
  $region18: #{_lambda_.1} parent=0 // pred_check
    _
  $region19: #{_lambda_.1} parent=0 // pred_check_branch
    %21 = sbr.rel (0) target = $region21
  $region20: #{_lambda_.1} parent=0 // pred_region
    _
  $region21: #{_lambda_.1} parent=0 // pred_fallthru
    _
  // Predicated region
  $region22: #{_lambda_.1} parent=0 // pred_check
    _
  $region23: #{_lambda_.1} parent=0 // pred_check_branch
    %23 = sbr.rel (0) target = $region25
  $region24: #{_lambda_.1} parent=0 // pred_region
    _
  $region25: #{_lambda_.1} parent=0 // pred_fallthru
    _
  // Predicated region
  $region26: #{_lambda_.1} parent=0 // pred_check
    _
  $region27: #{_lambda_.1} parent=0 // pred_check_branch
    %25 = sbr.rel (0) target = $region29
  $region28: #{_lambda_.1} parent=0 // pred_region
    _
  $region29: #{_lambda_.1} parent=0 // pred_fallthru
    _
  %v27 = vld [vmem:[%s0] sm:$0xf]
  %v28 = vld [vmem:[%s0 + $0x4] sm:$0xf]
  %29 = vst [vmem:[#allocation2] sm:$0x3] 0.0
  %v30 = vunpack.c.l.bf16 %v27
  %v31 = vunpack.c.l.bf16 %v28
  %32 = vst [vmem:[#allocation2 + $0x2] sm:$0xff] %v30
  %33 = vst [vmem:[#allocation2 + $0xa] sm:$0x3f] %v31
  %s34 = scalar_lea.vmem [#allocation2], 32
  %35 = vst [vmem:[%s34] sm:$0x1] 0.0
  %36 = vst [vmem:[%s34 + $0x1] sm:$0xff] %v30
  %37 = vst [vmem:[%s34 + $0x9] sm:$0x7f] %v31
  %s38 = scalar_lea.vmem [#allocation2], 64
  %39 = vst [vmem:[%s38] sm:$0xff] %v30
  %40 = vst [vmem:[%s38 + $0x8] sm:$0xff] %v31
  %s41 = scalar_lea.vmem [#allocation2], 96
  %42 = vst [vmem:[%s41 - $0x1] sm:$0xfe] %v30
  %43 = vst [vmem:[%s41 + $0x7] sm:$0xff] %v31
  %44 = vst [vmem:[%s41 + $0xf] sm:$0x1] 0.0
  %s45 = scalar_lea.vmem [#allocation2], 128
  %46 = vst [vmem:[%s45 - $0x2] sm:$0xfc] %v30
  %47 = vst [vmem:[%s45 + $0x6] sm:$0xff] %v31
  %48 = vst [vmem:[%s45 + $0xe] sm:$0x3] 0.0
  %s49 = scalar_lea.vmem %s0, 8
  %v50 = vld [vmem:[%s49] sm:$0xf]
  %v51 = vld [vmem:[%s49 + $0x4] sm:$0xf]
  %52 = vst [vmem:[#allocation2 + $0x10] sm:$0x3] 0.0
  %v53 = vunpack.c.l.bf16 %v50
  %v54 = vunpack.c.l.bf16 %v51
  %55 = vst [vmem:[#allocation2 + $0x12] sm:$0xff] %v53
  %56 = vst [vmem:[#allocation2 + $0x1a] sm:$0x3f] %v54
  %57 = vst [vmem:[%s34 + $0x10] sm:$0x1] 0.0
  %58 = vst [vmem:[%s34 + $0x11] sm:$0xff] %v53
  %59 = vst [vmem:[%s34 + $0x19] sm:$0x7f] %v54
  %60 = vst [vmem:[%s38 + $0x10] sm:$0xff] %v53
  %61 = vst [vmem:[%s38 + $0x18] sm:$0xff] %v54
  %62 = vst [vmem:[%s41 + $0xf] sm:$0xfe] %v53
  %63 = vst [vmem:[%s41 + $0x17] sm:$0xff] %v54
  %64 = vst [vmem:[%s41 + $0x1f] sm:$0x1] 0.0
  %65 = vst [vmem:[%s45 + $0xe] sm:$0xfc] %v53
  %66 = vst [vmem:[%s45 + $0x16] sm:$0xff] %v54
  %67 = vst [vmem:[%s45 + $0x1e] sm:$0x3] 0.0
  %v68 = vld [vmem:[#allocation2] sm:$0xff]
  %v69 = vld [vmem:[#allocation2 + $0x8] sm:$0xff]
  %v70 = vld [vmem:[#allocation2 + $0x10] sm:$0xff]
  %v71 = vld [vmem:[#allocation2 + $0x18] sm:$0xff]
  %v72 = vpack.c.bf16 %v69, %v68
  %v73 = vpack.c.bf16 %v71, %v70
  %v74 = vld [vmem:[%s1] sm:$0xf]
  %v75 = vld [vmem:[%s1 + $0x4] sm:$0xf]
  %v76 = vld [vmem:[%s1 + $0x8] sm:$0xf]
  %v77 = vld [vmem:[%s1 + $0xc] sm:$0xf]
  %v78 = vld [vmem:[%s1 + $0x10] sm:$0xf]
  %v79 = vld [vmem:[%s1 + $0x14] sm:$0xf]
  %v80 = vld [vmem:[%s1 + $0x18] sm:$0xf]
  %v81 = vld [vmem:[%s1 + $0x1c] sm:$0xf]
  %v82 = vld [vmem:[%s1 + $0x20] sm:$0xf]
  %v83 = vld [vmem:[%s1 + $0x24] sm:$0xf]
  %v84 = vld [vmem:[%s1 + $0x28] sm:$0xf]
  %v85 = vld [vmem:[%s1 + $0x2c] sm:$0xf]
  %v86 = vld [vmem:[%s1 + $0x30] sm:$0xf]
  %v87 = vld [vmem:[%s1 + $0x34] sm:$0xf]
  %v88 = vld [vmem:[%s1 + $0x38] sm:$0xf]
  %v89 = vld [vmem:[%s1 + $0x3c] sm:$0xf]
  %v90 = vld [vmem:[%s34] sm:$0xff]
  %v91 = vld [vmem:[%s34 + $0x8] sm:$0xff]
  %v92 = vld [vmem:[%s34 + $0x10] sm:$0xff]
  %v93 = vld [vmem:[%s34 + $0x18] sm:$0xff]
  %v94 = vpack.c.bf16 %v91, %v90
  %v95 = vpack.c.bf16 %v93, %v92
  %s96 = scalar_lea.vmem %s1, 64
  %v97 = vld [vmem:[%s96] sm:$0xf]
  %v98 = vld [vmem:[%s96 + $0x4] sm:$0xf]
  %v99 = vld [vmem:[%s96 + $0x8] sm:$0xf]
  %v100 = vld [vmem:[%s96 + $0xc] sm:$0xf]
  %v101 = vld [vmem:[%s96 + $0x10] sm:$0xf]
  %v102 = vld [vmem:[%s96 + $0x14] sm:$0xf]
  %v103 = vld [vmem:[%s96 + $0x18] sm:$0xf]
  %v104 = vld [vmem:[%s96 + $0x1c] sm:$0xf]
  %v105 = vld [vmem:[%s96 + $0x20] sm:$0xf]
  %v106 = vld [vmem:[%s96 + $0x24] sm:$0xf]
  %v107 = vld [vmem:[%s96 + $0x28] sm:$0xf]
  %v108 = vld [vmem:[%s96 + $0x2c] sm:$0xf]
  %v109 = vld [vmem:[%s96 + $0x30] sm:$0xf]
  %v110 = vld [vmem:[%s96 + $0x34] sm:$0xf]
  %v111 = vld [vmem:[%s96 + $0x38] sm:$0xf]
  %v112 = vld [vmem:[%s96 + $0x3c] sm:$0xf]
  %v129 = vunpack.c.l.b16 %v97
  %v130 = vunpack.c.l.b16 %v98
  %v131 = vunpack.c.l.b16 %v99
  %v132 = vunpack.c.l.b16 %v100
  %v133 = vunpack.c.l.b16 %v101
  %v134 = vunpack.c.l.b16 %v102
  %v135 = vunpack.c.l.b16 %v103
  %v136 = vunpack.c.l.b16 %v104
  %v137 = vunpack.c.l.b16 %v105
  %v138 = vunpack.c.l.b16 %v106
  %v139 = vunpack.c.l.b16 %v107
  %v140 = vunpack.c.l.b16 %v108
  %v141 = vunpack.c.l.b16 %v109
  %v142 = vunpack.c.l.b16 %v110
  %v143 = vunpack.c.l.b16 %v111
  %v144 = vunpack.c.l.b16 %v112
  %v145 = vpack.c.b16 %v130, %v129
  %v146 = vpack.c.b16 %v132, %v131
  %v147 = vpack.c.b16 %v134, %v133
  %v148 = vpack.c.b16 %v136, %v135
  %v149 = vpack.c.b16 %v138, %v137
  %v150 = vpack.c.b16 %v140, %v139
  %v151 = vpack.c.b16 %v142, %v141
  %v152 = vpack.c.b16 %v144, %v143
  %161 = vmatprep.subr.bf16.mxu0 0
  %162 = vmatpush1.bf16.msra.mxu0 %v152
  %163 = vmatprep.subr.bf16.mxu0 0
  %164 = vmatpush1.bf16.msra.mxu0 %v151
  %165 = vmatprep.subr.bf16.mxu0 0
  %166 = vmatpush1.bf16.msra.mxu0 %v150
  %167 = vmatprep.subr.bf16.mxu0 0
  %168 = vmatpush1.bf16.msra.mxu0 %v149
  %169 = vmatprep.subr.bf16.mxu0 0
  %170 = vmatpush1.bf16.msra.mxu0 %v148
  %171 = vmatprep.subr.bf16.mxu0 0
  %172 = vmatpush1.bf16.msra.mxu0 %v147
  %173 = vmatprep.subr.bf16.mxu0 0
  %174 = vmatpush1.bf16.msra.mxu0 %v146
  %175 = vmatprep.subr.bf16.mxu0 0
  %176 = vmatpush1.bf16.msra.mxu0 %v145
  %177 = vmatprep.subr.bf16.mxu0 0
  %178 = vmatpush2.bf16.msra.mxu0 0
  %179 = vmatprep.subr.bf16.mxu0 0
  %180 = vmatpush2.bf16.msra.mxu0 0
  %181 = vmatprep.subr.bf16.mxu0 0
  %182 = vmatpush2.bf16.msra.mxu0 0
  %183 = vmatprep.subr.bf16.mxu0 0
  %184 = vmatpush2.bf16.msra.mxu0 0
  %185 = vmatprep.subr.bf16.mxu0 0
  %186 = vmatpush2.bf16.msra.mxu0 0
  %187 = vmatprep.subr.bf16.mxu0 0
  %188 = vmatpush2.bf16.msra.mxu0 0
  %189 = vmatprep.subr.bf16.mxu0 0
  %190 = vmatpush2.bf16.msra.mxu0 0
  %191 = vmatprep.subr.bf16.mxu0 0
  %192 = vmatpush2.bf16.msra.mxu0 0
  %193 = vmatprep.mubr.bf16.mxu0 0
  %194 = vmatmul.mubr.bf16.gmra.mxu0 %v94
  %v195 = vpop.f32.mrf.mxu0
  %v196 = vadd.f32 0.0, %v195
  %v197 = vpop.f32.mrf.mxu0
  %v198 = vpop.f32.mrf.mxu0
  %v199 = vadd.f32 0.0, %v198
  %v200 = vpop.f32.mrf.mxu0
  %201 = vmatprep.mubr.bf16.mxu0 0
  %202 = vmatmul.mubr.bf16.gmra.mxu0 %v95
  %v203 = vpop.f32.mrf.mxu0
  %v204 = vadd.f32 0.0, %v203
  %v205 = vpop.f32.mrf.mxu0
  %v206 = vpop.f32.mrf.mxu0
  %v207 = vadd.f32 0.0, %v206
  %v208 = vpop.f32.mrf.mxu0
  %209 = vdwg.mxu0
  %v226 = vunpack.c.l.b16 %v74
  %v227 = vunpack.c.l.b16 %v75
  %v228 = vunpack.c.l.b16 %v76
  %v229 = vunpack.c.l.b16 %v77
  %v230 = vunpack.c.l.b16 %v78
  %v231 = vunpack.c.l.b16 %v79
  %v232 = vunpack.c.l.b16 %v80
  %v233 = vunpack.c.l.b16 %v81
  %v234 = vunpack.c.l.b16 %v82
  %v235 = vunpack.c.l.b16 %v83
  %v236 = vunpack.c.l.b16 %v84
  %v237 = vunpack.c.l.b16 %v85
  %v238 = vunpack.c.l.b16 %v86
  %v239 = vunpack.c.l.b16 %v87
  %v240 = vunpack.c.l.b16 %v88
  %v241 = vunpack.c.l.b16 %v89
  %v242 = vpack.c.b16 %v227, %v226
  %v243 = vpack.c.b16 %v229, %v228
  %v244 = vpack.c.b16 %v231, %v230
  %v245 = vpack.c.b16 %v233, %v232
  %v246 = vpack.c.b16 %v235, %v234
  %v247 = vpack.c.b16 %v237, %v236
  %v248 = vpack.c.b16 %v239, %v238
  %v249 = vpack.c.b16 %v241, %v240
  %258 = vmatprep.subr.bf16.mxu0 0
  %259 = vmatpush1.bf16.msra.mxu0 %v249
  %260 = vmatprep.subr.bf16.mxu0 0
  %261 = vmatpush1.bf16.msra.mxu0 %v248
  %262 = vmatprep.subr.bf16.mxu0 0
  %263 = vmatpush1.bf16.msra.mxu0 %v247
  %264 = vmatprep.subr.bf16.mxu0 0
  %265 = vmatpush1.bf16.msra.mxu0 %v246
  %266 = vmatprep.subr.bf16.mxu0 0
  %267 = vmatpush1.bf16.msra.mxu0 %v245
  %268 = vmatprep.subr.bf16.mxu0 0
  %269 = vmatpush1.bf16.msra.mxu0 %v244
  %270 = vmatprep.subr.bf16.mxu0 0
  %271 = vmatpush1.bf16.msra.mxu0 %v243
  %272 = vmatprep.subr.bf16.mxu0 0
  %273 = vmatpush1.bf16.msra.mxu0 %v242
  %274 = vmatprep.subr.bf16.mxu0 0
  %275 = vmatpush2.bf16.msra.mxu0 0
  %276 = vmatprep.subr.bf16.mxu0 0
  %277 = vmatpush2.bf16.msra.mxu0 0
  %278 = vmatprep.subr.bf16.mxu0 0
  %279 = vmatpush2.bf16.msra.mxu0 0
  %280 = vmatprep.subr.bf16.mxu0 0
  %281 = vmatpush2.bf16.msra.mxu0 0
  %282 = vmatprep.subr.bf16.mxu0 0
  %283 = vmatpush2.bf16.msra.mxu0 0
  %284 = vmatprep.subr.bf16.mxu0 0
  %285 = vmatpush2.bf16.msra.mxu0 0
  %286 = vmatprep.subr.bf16.mxu0 0
  %287 = vmatpush2.bf16.msra.mxu0 0
  %288 = vmatprep.subr.bf16.mxu0 0
  %289 = vmatpush2.bf16.msra.mxu0 0
  %290 = vmatprep.mubr.bf16.mxu0 0
  %291 = vmatmul.mubr.bf16.gmra.mxu0 %v72
  %v292 = vpop.f32.mrf.mxu0
  %v293 = vadd.f32 %v196, %v292
  %v294 = vpop.f32.mrf.mxu0
  %v295 = vpop.f32.mrf.mxu0
  %v296 = vadd.f32 %v199, %v295
  %v297 = vpop.f32.mrf.mxu0
  %298 = vmatprep.mubr.bf16.mxu0 0
  %299 = vmatmul.mubr.bf16.gmra.mxu0 %v73
  %v300 = vpop.f32.mrf.mxu0
  %v301 = vadd.f32 %v204, %v300
  %v302 = vpop.f32.mrf.mxu0
  %v303 = vpop.f32.mrf.mxu0
  %v304 = vadd.f32 %v207, %v303
  %v305 = vpop.f32.mrf.mxu0
  %306 = vdwg.mxu0
  %v307 = vld [vmem:[%s38] sm:$0xff]
  %v308 = vld [vmem:[%s38 + $0x8] sm:$0xff]
  %v309 = vld [vmem:[%s38 + $0x10] sm:$0xff]
  %v310 = vld [vmem:[%s38 + $0x18] sm:$0xff]
  %v311 = vpack.c.bf16 %v308, %v307
  %v312 = vpack.c.bf16 %v310, %v309
  %s313 = scalar_lea.vmem %s1, 128
  %v314 = vld [vmem:[%s313] sm:$0xf]
  %v315 = vld [vmem:[%s313 + $0x4] sm:$0xf]
  %v316 = vld [vmem:[%s313 + $0x8] sm:$0xf]
  %v317 = vld [vmem:[%s313 + $0xc] sm:$0xf]
  %v318 = vld [vmem:[%s313 + $0x10] sm:$0xf]
  %v319 = vld [vmem:[%s313 + $0x14] sm:$0xf]
  %v320 = vld [vmem:[%s313 + $0x18] sm:$0xf]
  %v321 = vld [vmem:[%s313 + $0x1c] sm:$0xf]
  %v322 = vld [vmem:[%s313 + $0x20] sm:$0xf]
  %v323 = vld [vmem:[%s313 + $0x24] sm:$0xf]
  %v324 = vld [vmem:[%s313 + $0x28] sm:$0xf]
  %v325 = vld [vmem:[%s313 + $0x2c] sm:$0xf]
  %v326 = vld [vmem:[%s313 + $0x30] sm:$0xf]
  %v327 = vld [vmem:[%s313 + $0x34] sm:$0xf]
  %v328 = vld [vmem:[%s313 + $0x38] sm:$0xf]
  %v329 = vld [vmem:[%s313 + $0x3c] sm:$0xf]
  %v346 = vunpack.c.l.b16 %v314
  %v347 = vunpack.c.l.b16 %v315
  %v348 = vunpack.c.l.b16 %v316
  %v349 = vunpack.c.l.b16 %v317
  %v350 = vunpack.c.l.b16 %v318
  %v351 = vunpack.c.l.b16 %v319
  %v352 = vunpack.c.l.b16 %v320
  %v353 = vunpack.c.l.b16 %v321
  %v354 = vunpack.c.l.b16 %v322
  %v355 = vunpack.c.l.b16 %v323
  %v356 = vunpack.c.l.b16 %v324
  %v357 = vunpack.c.l.b16 %v325
  %v358 = vunpack.c.l.b16 %v326
  %v359 = vunpack.c.l.b16 %v327
  %v360 = vunpack.c.l.b16 %v328
  %v361 = vunpack.c.l.b16 %v329
  %v362 = vpack.c.b16 %v347, %v346
  %v363 = vpack.c.b16 %v349, %v348
  %v364 = vpack.c.b16 %v351, %v350
  %v365 = vpack.c.b16 %v353, %v352
  %v366 = vpack.c.b16 %v355, %v354
  %v367 = vpack.c.b16 %v357, %v356
  %v368 = vpack.c.b16 %v359, %v358
  %v369 = vpack.c.b16 %v361, %v360
  %378 = vmatprep.subr.bf16.mxu0 0
  %379 = vmatpush1.bf16.msra.mxu0 %v369
  %380 = vmatprep.subr.bf16.mxu0 0
  %381 = vmatpush1.bf16.msra.mxu0 %v368
  %382 = vmatprep.subr.bf16.mxu0 0
  %383 = vmatpush1.bf16.msra.mxu0 %v367
  %384 = vmatprep.subr.bf16.mxu0 0
  %385 = vmatpush1.bf16.msra.mxu0 %v366
  %386 = vmatprep.subr.bf16.mxu0 0
  %387 = vmatpush1.bf16.msra.mxu0 %v365
  %388 = vmatprep.subr.bf16.mxu0 0
  %389 = vmatpush1.bf16.msra.mxu0 %v364
  %390 = vmatprep.subr.bf16.mxu0 0
  %391 = vmatpush1.bf16.msra.mxu0 %v363
  %392 = vmatprep.subr.bf16.mxu0 0
  %393 = vmatpush1.bf16.msra.mxu0 %v362
  %394 = vmatprep.subr.bf16.mxu0 0
  %395 = vmatpush2.bf16.msra.mxu0 0
  %396 = vmatprep.subr.bf16.mxu0 0
  %397 = vmatpush2.bf16.msra.mxu0 0
  %398 = vmatprep.subr.bf16.mxu0 0
  %399 = vmatpush2.bf16.msra.mxu0 0
  %400 = vmatprep.subr.bf16.mxu0 0
  %401 = vmatpush2.bf16.msra.mxu0 0
  %402 = vmatprep.subr.bf16.mxu0 0
  %403 = vmatpush2.bf16.msra.mxu0 0
  %404 = vmatprep.subr.bf16.mxu0 0
  %405 = vmatpush2.bf16.msra.mxu0 0
  %406 = vmatprep.subr.bf16.mxu0 0
  %407 = vmatpush2.bf16.msra.mxu0 0
  %408 = vmatprep.subr.bf16.mxu0 0
  %409 = vmatpush2.bf16.msra.mxu0 0
  %410 = vmatprep.mubr.bf16.mxu0 0
  %411 = vmatmul.mubr.bf16.gmra.mxu0 %v311
  %v412 = vpop.f32.mrf.mxu0
  %v413 = vadd.f32 0.0, %v412
  %v414 = vpop.f32.mrf.mxu0
  %v415 = vpop.f32.mrf.mxu0
  %v416 = vadd.f32 0.0, %v415
  %v417 = vpop.f32.mrf.mxu0
  %418 = vmatprep.mubr.bf16.mxu0 0
  %419 = vmatmul.mubr.bf16.gmra.mxu0 %v312
  %v420 = vpop.f32.mrf.mxu0
  %v421 = vadd.f32 0.0, %v420
  %v422 = vpop.f32.mrf.mxu0
  %v423 = vpop.f32.mrf.mxu0
  %v424 = vadd.f32 0.0, %v423
  %v425 = vpop.f32.mrf.mxu0
  %426 = vdwg.mxu0
  %v427 = vadd.f32 %v293, %v413
  %v428 = vadd.f32 %v296, %v416
  %v429 = vadd.f32 %v301, %v421
  %v430 = vadd.f32 %v304, %v424
  %v431 = vld [vmem:[%s41] sm:$0xff]
  %v432 = vld [vmem:[%s41 + $0x8] sm:$0xff]
  %v433 = vld [vmem:[%s41 + $0x10] sm:$0xff]
  %v434 = vld [vmem:[%s41 + $0x18] sm:$0xff]
  %v435 = vpack.c.bf16 %v432, %v431
  %v436 = vpack.c.bf16 %v434, %v433
  %s437 = scalar_lea.vmem %s1, 192
  %v438 = vld [vmem:[%s437] sm:$0xf]
  %v439 = vld [vmem:[%s437 + $0x4] sm:$0xf]
  %v440 = vld [vmem:[%s437 + $0x8] sm:$0xf]
  %v441 = vld [vmem:[%s437 + $0xc] sm:$0xf]
  %v442 = vld [vmem:[%s437 + $0x10] sm:$0xf]
  %v443 = vld [vmem:[%s437 + $0x14] sm:$0xf]
  %v444 = vld [vmem:[%s437 + $0x18] sm:$0xf]
  %v445 = vld [vmem:[%s437 + $0x1c] sm:$0xf]
  %v446 = vld [vmem:[%s437 + $0x20] sm:$0xf]
  %v447 = vld [vmem:[%s437 + $0x24] sm:$0xf]
  %v448 = vld [vmem:[%s437 + $0x28] sm:$0xf]
  %v449 = vld [vmem:[%s437 + $0x2c] sm:$0xf]
  %v450 = vld [vmem:[%s437 + $0x30] sm:$0xf]
  %v451 = vld [vmem:[%s437 + $0x34] sm:$0xf]
  %v452 = vld [vmem:[%s437 + $0x38] sm:$0xf]
  %v453 = vld [vmem:[%s437 + $0x3c] sm:$0xf]
  %v470 = vunpack.c.l.b16 %v438
  %v471 = vunpack.c.l.b16 %v439
  %v472 = vunpack.c.l.b16 %v440
  %v473 = vunpack.c.l.b16 %v441
  %v474 = vunpack.c.l.b16 %v442
  %v475 = vunpack.c.l.b16 %v443
  %v476 = vunpack.c.l.b16 %v444
  %v477 = vunpack.c.l.b16 %v445
  %v478 = vunpack.c.l.b16 %v446
  %v479 = vunpack.c.l.b16 %v447
  %v480 = vunpack.c.l.b16 %v448
  %v481 = vunpack.c.l.b16 %v449
  %v482 = vunpack.c.l.b16 %v450
  %v483 = vunpack.c.l.b16 %v451
  %v484 = vunpack.c.l.b16 %v452
  %v485 = vunpack.c.l.b16 %v453
  %v486 = vpack.c.b16 %v471, %v470
  %v487 = vpack.c.b16 %v473, %v472
  %v488 = vpack.c.b16 %v475, %v474
  %v489 = vpack.c.b16 %v477, %v476
  %v490 = vpack.c.b16 %v479, %v478
  %v491 = vpack.c.b16 %v481, %v480
  %v492 = vpack.c.b16 %v483, %v482
  %v493 = vpack.c.b16 %v485, %v484
  %502 = vmatprep.subr.bf16.mxu0 0
  %503 = vmatpush1.bf16.msra.mxu0 %v493
  %504 = vmatprep.subr.bf16.mxu0 0
  %505 = vmatpush1.bf16.msra.mxu0 %v492
  %506 = vmatprep.subr.bf16.mxu0 0
  %507 = vmatpush1.bf16.msra.mxu0 %v491
  %508 = vmatprep.subr.bf16.mxu0 0
  %509 = vmatpush1.bf16.msra.mxu0 %v490
  %510 = vmatprep.subr.bf16.mxu0 0
  %511 = vmatpush1.bf16.msra.mxu0 %v489
  %512 = vmatprep.subr.bf16.mxu0 0
  %513 = vmatpush1.bf16.msra.mxu0 %v488
  %514 = vmatprep.subr.bf16.mxu0 0
  %515 = vmatpush1.bf16.msra.mxu0 %v487
  %516 = vmatprep.subr.bf16.mxu0 0
  %517 = vmatpush1.bf16.msra.mxu0 %v486
  %518 = vmatprep.subr.bf16.mxu0 0
  %519 = vmatpush2.bf16.msra.mxu0 0
  %520 = vmatprep.subr.bf16.mxu0 0
  %521 = vmatpush2.bf16.msra.mxu0 0
  %522 = vmatprep.subr.bf16.mxu0 0
  %523 = vmatpush2.bf16.msra.mxu0 0
  %524 = vmatprep.subr.bf16.mxu0 0
  %525 = vmatpush2.bf16.msra.mxu0 0
  %526 = vmatprep.subr.bf16.mxu0 0
  %527 = vmatpush2.bf16.msra.mxu0 0
  %528 = vmatprep.subr.bf16.mxu0 0
  %529 = vmatpush2.bf16.msra.mxu0 0
  %530 = vmatprep.subr.bf16.mxu0 0
  %531 = vmatpush2.bf16.msra.mxu0 0
  %532 = vmatprep.subr.bf16.mxu0 0
  %533 = vmatpush2.bf16.msra.mxu0 0
  %534 = vmatprep.mubr.bf16.mxu0 0
  %535 = vmatmul.mubr.bf16.gmra.mxu0 %v435
  %v536 = vpop.f32.mrf.mxu0
  %v537 = vadd.f32 0.0, %v536
  %v538 = vpop.f32.mrf.mxu0
  %v539 = vpop.f32.mrf.mxu0
  %v540 = vadd.f32 0.0, %v539
  %v541 = vpop.f32.mrf.mxu0
  %542 = vmatprep.mubr.bf16.mxu0 0
  %543 = vmatmul.mubr.bf16.gmra.mxu0 %v436
  %v544 = vpop.f32.mrf.mxu0
  %v545 = vadd.f32 0.0, %v544
  %v546 = vpop.f32.mrf.mxu0
  %v547 = vpop.f32.mrf.mxu0
  %v548 = vadd.f32 0.0, %v547
  %v549 = vpop.f32.mrf.mxu0
  %550 = vdwg.mxu0
  %v551 = vadd.f32 %v427, %v537
  %v552 = vadd.f32 %v428, %v540
  %v553 = vadd.f32 %v429, %v545
  %v554 = vadd.f32 %v430, %v548
  %v555 = vld [vmem:[%s45] sm:$0xff]
  %v556 = vld [vmem:[%s45 + $0x8] sm:$0xff]
  %v557 = vld [vmem:[%s45 + $0x10] sm:$0xff]
  %v558 = vld [vmem:[%s45 + $0x18] sm:$0xff]
  %v559 = vpack.c.bf16 %v556, %v555
  %v560 = vpack.c.bf16 %v558, %v557
  %s561 = scalar_lea.vmem %s1, 256
  %v562 = vld [vmem:[%s561] sm:$0xf]
  %v563 = vld [vmem:[%s561 + $0x4] sm:$0xf]
  %v564 = vld [vmem:[%s561 + $0x8] sm:$0xf]
  %v565 = vld [vmem:[%s561 + $0xc] sm:$0xf]
  %v566 = vld [vmem:[%s561 + $0x10] sm:$0xf]
  %v567 = vld [vmem:[%s561 + $0x14] sm:$0xf]
  %v568 = vld [vmem:[%s561 + $0x18] sm:$0xf]
  %v569 = vld [vmem:[%s561 + $0x1c] sm:$0xf]
  %v570 = vld [vmem:[%s561 + $0x20] sm:$0xf]
  %v571 = vld [vmem:[%s561 + $0x24] sm:$0xf]
  %v572 = vld [vmem:[%s561 + $0x28] sm:$0xf]
  %v573 = vld [vmem:[%s561 + $0x2c] sm:$0xf]
  %v574 = vld [vmem:[%s561 + $0x30] sm:$0xf]
  %v575 = vld [vmem:[%s561 + $0x34] sm:$0xf]
  %v576 = vld [vmem:[%s561 + $0x38] sm:$0xf]
  %v577 = vld [vmem:[%s561 + $0x3c] sm:$0xf]
  %v594 = vunpack.c.l.b16 %v562
  %v595 = vunpack.c.l.b16 %v563
  %v596 = vunpack.c.l.b16 %v564
  %v597 = vunpack.c.l.b16 %v565
  %v598 = vunpack.c.l.b16 %v566
  %v599 = vunpack.c.l.b16 %v567
  %v600 = vunpack.c.l.b16 %v568
  %v601 = vunpack.c.l.b16 %v569
  %v602 = vunpack.c.l.b16 %v570
  %v603 = vunpack.c.l.b16 %v571
  %v604 = vunpack.c.l.b16 %v572
  %v605 = vunpack.c.l.b16 %v573
  %v606 = vunpack.c.l.b16 %v574
  %v607 = vunpack.c.l.b16 %v575
  %v608 = vunpack.c.l.b16 %v576
  %v609 = vunpack.c.l.b16 %v577
  %v610 = vpack.c.b16 %v595, %v594
  %v611 = vpack.c.b16 %v597, %v596
  %v612 = vpack.c.b16 %v599, %v598
  %v613 = vpack.c.b16 %v601, %v600
  %v614 = vpack.c.b16 %v603, %v602
  %v615 = vpack.c.b16 %v605, %v604
  %v616 = vpack.c.b16 %v607, %v606
  %v617 = vpack.c.b16 %v609, %v608
  %626 = vmatprep.subr.bf16.mxu0 0
  %627 = vmatpush1.bf16.msra.mxu0 %v617
  %628 = vmatprep.subr.bf16.mxu0 0
  %629 = vmatpush1.bf16.msra.mxu0 %v616
  %630 = vmatprep.subr.bf16.mxu0 0
  %631 = vmatpush1.bf16.msra.mxu0 %v615
  %632 = vmatprep.subr.bf16.mxu0 0
  %633 = vmatpush1.bf16.msra.mxu0 %v614
  %634 = vmatprep.subr.bf16.mxu0 0
  %635 = vmatpush1.bf16.msra.mxu0 %v613
  %636 = vmatprep.subr.bf16.mxu0 0
  %637 = vmatpush1.bf16.msra.mxu0 %v612
  %638 = vmatprep.subr.bf16.mxu0 0
  %639 = vmatpush1.bf16.msra.mxu0 %v611
  %640 = vmatprep.subr.bf16.mxu0 0
  %641 = vmatpush1.bf16.msra.mxu0 %v610
  %642 = vmatprep.subr.bf16.mxu0 0
  %643 = vmatpush2.bf16.msra.mxu0 0
  %644 = vmatprep.subr.bf16.mxu0 0
  %645 = vmatpush2.bf16.msra.mxu0 0
  %646 = vmatprep.subr.bf16.mxu0 0
  %647 = vmatpush2.bf16.msra.mxu0 0
  %648 = vmatprep.subr.bf16.mxu0 0
  %649 = vmatpush2.bf16.msra.mxu0 0
  %650 = vmatprep.subr.bf16.mxu0 0
  %651 = vmatpush2.bf16.msra.mxu0 0
  %652 = vmatprep.subr.bf16.mxu0 0
  %653 = vmatpush2.bf16.msra.mxu0 0
  %654 = vmatprep.subr.bf16.mxu0 0
  %655 = vmatpush2.bf16.msra.mxu0 0
  %656 = vmatprep.subr.bf16.mxu0 0
  %657 = vmatpush2.bf16.msra.mxu0 0
  %658 = vmatprep.mubr.bf16.mxu0 0
  %659 = vmatmul.mubr.bf16.gmra.mxu0 %v559
  %v660 = vpop.f32.mrf.mxu0
  %v661 = vadd.f32 0.0, %v660
  %v662 = vpop.f32.mrf.mxu0
  %v663 = vpop.f32.mrf.mxu0
  %v664 = vadd.f32 0.0, %v663
  %v665 = vpop.f32.mrf.mxu0
  %666 = vmatprep.mubr.bf16.mxu0 0
  %667 = vmatmul.mubr.bf16.gmra.mxu0 %v560
  %v668 = vpop.f32.mrf.mxu0
  %v669 = vadd.f32 0.0, %v668
  %v670 = vpop.f32.mrf.mxu0
  %v671 = vpop.f32.mrf.mxu0
  %v672 = vadd.f32 0.0, %v671
  %v673 = vpop.f32.mrf.mxu0
  %674 = vdwg.mxu0
  %v675 = vadd.f32 %v551, %v661
  %v676 = vadd.f32 %v552, %v664
  %v677 = vadd.f32 %v553, %v669
  %v678 = vadd.f32 %v554, %v672
  %v679 = vld [vmem:[%s2] sm:$0x1]
  %v681 = vlaneseq
  %v682 = vshrl.u32 %v681, 7
  %v683 = vsub.s32 0, %v682
  %v684 = vrot.slane %v679, %v683
  %v686 = vadd.f32 %v675, %v684
  %v687 = vadd.f32 %v676, %v684
  %v688 = vadd.f32 %v677, %v684
  %v689 = vadd.f32 %v678, %v684
  %v690 = vmax.f32 %v686, 0.0
  %v691 = vmax.f32 %v687, 0.0
  %v692 = vmax.f32 %v688, 0.0
  %v693 = vmax.f32 %v689, 0.0
  %vm694 = vcmask 517120
  %695 = vst.msk [vmem:[#allocation3] sm:$0x3] %vm694, 0.0
  %vm696 = vcmask 523264
  %697 = vst.msk [vmem:[#allocation3 + $0x2] sm:$0xff] %vm696, %v690
  %vm698 = vcmask 521216
  %699 = vst.msk [vmem:[#allocation3 + $0xa] sm:$0x3f] %vm698, %v691
  %s700 = scalar_lea.vmem [#allocation3], 32
  %vm701 = vcmask 516096
  %702 = vst.msk [vmem:[%s700] sm:$0x1] %vm701, 0.0
  %703 = vst.msk [vmem:[%s700 + $0x1] sm:$0xff] %vm696, %v690
  %vm704 = vcmask 522240
  %705 = vst.msk [vmem:[%s700 + $0x9] sm:$0x7f] %vm704, %v691
  %s706 = scalar_lea.vmem [#allocation3], 64
  %707 = vst.msk [vmem:[%s706] sm:$0xff] %vm696, %v690
  %708 = vst.msk [vmem:[%s706 + $0x8] sm:$0xff] %vm696, %v691
  %s709 = scalar_lea.vmem [#allocation3], 96
  %vm710 = vcmask 523265
  %711 = vst.msk [vmem:[%s709 - $0x1] sm:$0xfe] %vm710, %v690
  %712 = vst.msk [vmem:[%s709 + $0x7] sm:$0xff] %vm696, %v691
  %713 = vst.msk [vmem:[%s709 + $0xf] sm:$0x1] %vm701, 0.0
  %s714 = scalar_lea.vmem [#allocation3], 128
  %vm715 = vcmask 523266
  %716 = vst.msk [vmem:[%s714 - $0x2] sm:$0xfc] %vm715, %v690
  %717 = vst.msk [vmem:[%s714 + $0x6] sm:$0xff] %vm696, %v691
  %718 = vst.msk [vmem:[%s714 + $0xe] sm:$0x3] %vm694, 0.0
  %719 = vst.msk [vmem:[#allocation3 + $0x10] sm:$0x3] %vm694, 0.0
  %720 = vst.msk [vmem:[#allocation3 + $0x12] sm:$0xff] %vm696, %v692
  %721 = vst.msk [vmem:[#allocation3 + $0x1a] sm:$0x3f] %vm698, %v693
  %722 = vst.msk [vmem:[%s700 + $0x10] sm:$0x1] %vm701, 0.0
  %723 = vst.msk [vmem:[%s700 + $0x11] sm:$0xff] %vm696, %v692
  %724 = vst.msk [vmem:[%s700 + $0x19] sm:$0x7f] %vm704, %v693
  %725 = vst.msk [vmem:[%s706 + $0x10] sm:$0xff] %vm696, %v692
  %726 = vst.msk [vmem:[%s706 + $0x18] sm:$0xff] %vm696, %v693
  %727 = vst.msk [vmem:[%s709 + $0xf] sm:$0xfe] %vm710, %v692
  %728 = vst.msk [vmem:[%s709 + $0x17] sm:$0xff] %vm696, %v693
  %729 = vst.msk [vmem:[%s709 + $0x1f] sm:$0x1] %vm701, 0.0
  %730 = vst.msk [vmem:[%s714 + $0xe] sm:$0xfc] %vm715, %v692
  %731 = vst.msk [vmem:[%s714 + $0x16] sm:$0xff] %vm696, %v693
  %732 = vst.msk [vmem:[%s714 + $0x1e] sm:$0x3] %vm694, 0.0
  %v733 = vld [vmem:[#allocation3] sm:$0xff]
  %v734 = vld [vmem:[#allocation3 + $0x8] sm:$0xff]
  %v735 = vld [vmem:[#allocation3 + $0x10] sm:$0xff]
  %v736 = vld [vmem:[#allocation3 + $0x18] sm:$0xff]
  %v737 = vpack.c.bf16 %v734, %v733
  %v738 = vpack.c.bf16 %v736, %v735
  %v739 = vld [vmem:[%s3] sm:$0xf]
  %v740 = vld [vmem:[%s3 + $0x4] sm:$0xf]
  %v741 = vld [vmem:[%s3 + $0x8] sm:$0xf]
  %v742 = vld [vmem:[%s3 + $0xc] sm:$0xf]
  %v743 = vld [vmem:[%s3 + $0x10] sm:$0xf]
  %v744 = vld [vmem:[%s3 + $0x14] sm:$0xf]
  %v745 = vld [vmem:[%s3 + $0x18] sm:$0xf]
  %v746 = vld [vmem:[%s3 + $0x1c] sm:$0xf]
  %v747 = vld [vmem:[%s700] sm:$0xff]
  %v748 = vld [vmem:[%s700 + $0x8] sm:$0xff]
  %v749 = vld [vmem:[%s700 + $0x10] sm:$0xff]
  %v750 = vld [vmem:[%s700 + $0x18] sm:$0xff]
  %v751 = vpack.c.bf16 %v748, %v747
  %v752 = vpack.c.bf16 %v750, %v749
  %s753 = scalar_lea.vmem %s3, 32
  %v754 = vld [vmem:[%s753] sm:$0xf]
  %v755 = vld [vmem:[%s753 + $0x4] sm:$0xf]
  %v756 = vld [vmem:[%s753 + $0x8] sm:$0xf]
  %v757 = vld [vmem:[%s753 + $0xc] sm:$0xf]
  %v758 = vld [vmem:[%s753 + $0x10] sm:$0xf]
  %v759 = vld [vmem:[%s753 + $0x14] sm:$0xf]
  %v760 = vld [vmem:[%s753 + $0x18] sm:$0xf]
  %v761 = vld [vmem:[%s753 + $0x1c] sm:$0xf]
  %v770 = vunpack.c.l.b16 %v754
  %v771 = vunpack.c.l.b16 %v755
  %v772 = vunpack.c.l.b16 %v756
  %v773 = vunpack.c.l.b16 %v757
  %v774 = vunpack.c.l.b16 %v758
  %v775 = vunpack.c.l.b16 %v759
  %v776 = vunpack.c.l.b16 %v760
  %v777 = vunpack.c.l.b16 %v761
  %v778 = vpack.c.b16 %v771, %v770
  %v779 = vpack.c.b16 %v773, %v772
  %v780 = vpack.c.b16 %v775, %v774
  %v781 = vpack.c.b16 %v777, %v776
  %v787 = vsel %vm696, %v751, 0
  %v790 = vsel %vm696, %v752, 0
  %792 = vmatprep.subr.bf16.mxu0 0
  %793 = vmatpush1.bf16.msra.mxu0 0
  %794 = vmatprep.subr.bf16.mxu0 0
  %795 = vmatpush1.bf16.msra.mxu0 0
  %796 = vmatprep.subr.bf16.mxu0 0
  %797 = vmatpush1.bf16.msra.mxu0 0
  %798 = vmatprep.subr.bf16.mxu0 0
  %799 = vmatpush1.bf16.msra.mxu0 0
  %800 = vmatprep.subr.bf16.mxu0 0
  %801 = vmatpush1.bf16.msra.mxu0 %v781
  %802 = vmatprep.subr.bf16.mxu0 0
  %803 = vmatpush1.bf16.msra.mxu0 %v780
  %804 = vmatprep.subr.bf16.mxu0 0
  %805 = vmatpush1.bf16.msra.mxu0 %v779
  %806 = vmatprep.subr.bf16.mxu0 0
  %807 = vmatpush1.bf16.msra.mxu0 %v778
  %808 = vmatprep.subr.bf16.mxu0 0
  %809 = vmatpush2.bf16.msra.mxu0 0
  %810 = vmatprep.subr.bf16.mxu0 0
  %811 = vmatpush2.bf16.msra.mxu0 0
  %812 = vmatprep.subr.bf16.mxu0 0
  %813 = vmatpush2.bf16.msra.mxu0 0
  %814 = vmatprep.subr.bf16.mxu0 0
  %815 = vmatpush2.bf16.msra.mxu0 0
  %816 = vmatprep.subr.bf16.mxu0 0
  %817 = vmatpush2.bf16.msra.mxu0 0
  %818 = vmatprep.subr.bf16.mxu0 0
  %819 = vmatpush2.bf16.msra.mxu0 0
  %820 = vmatprep.subr.bf16.mxu0 0
  %821 = vmatpush2.bf16.msra.mxu0 0
  %822 = vmatprep.subr.bf16.mxu0 0
  %823 = vmatpush2.bf16.msra.mxu0 0
  %824 = vmatprep.mubr.bf16.mxu0 0
  %825 = vmatmul.mubr.bf16.gmra.mxu0 %v787
  %v826 = vpop.f32.mrf.mxu0
  %v827 = vadd.f32 0.0, %v826
  %v828 = vpop.f32.mrf.mxu0
  %v829 = vpop.f32.mrf.mxu0
  %v830 = vadd.f32 0.0, %v829
  %v831 = vpop.f32.mrf.mxu0
  %832 = vmatprep.mubr.bf16.mxu0 0
  %833 = vmatmul.mubr.bf16.gmra.mxu0 %v790
  %v834 = vpop.f32.mrf.mxu0
  %v835 = vadd.f32 0.0, %v834
  %v836 = vpop.f32.mrf.mxu0
  %v837 = vpop.f32.mrf.mxu0
  %v838 = vadd.f32 0.0, %v837
  %v839 = vpop.f32.mrf.mxu0
  %840 = vdwg.mxu0
  %v849 = vunpack.c.l.b16 %v739
  %v850 = vunpack.c.l.b16 %v740
  %v851 = vunpack.c.l.b16 %v741
  %v852 = vunpack.c.l.b16 %v742
  %v853 = vunpack.c.l.b16 %v743
  %v854 = vunpack.c.l.b16 %v744
  %v855 = vunpack.c.l.b16 %v745
  %v856 = vunpack.c.l.b16 %v746
  %v857 = vpack.c.b16 %v850, %v849
  %v858 = vpack.c.b16 %v852, %v851
  %v859 = vpack.c.b16 %v854, %v853
  %v860 = vpack.c.b16 %v856, %v855
  %v866 = vsel %vm696, %v737, 0
  %v869 = vsel %vm696, %v738, 0
  %871 = vmatprep.subr.bf16.mxu0 0
  %872 = vmatpush1.bf16.msra.mxu0 0
  %873 = vmatprep.subr.bf16.mxu0 0
  %874 = vmatpush1.bf16.msra.mxu0 0
  %875 = vmatprep.subr.bf16.mxu0 0
  %876 = vmatpush1.bf16.msra.mxu0 0
  %877 = vmatprep.subr.bf16.mxu0 0
  %878 = vmatpush1.bf16.msra.mxu0 0
  %879 = vmatprep.subr.bf16.mxu0 0
  %880 = vmatpush1.bf16.msra.mxu0 %v860
  %881 = vmatprep.subr.bf16.mxu0 0
  %882 = vmatpush1.bf16.msra.mxu0 %v859
  %883 = vmatprep.subr.bf16.mxu0 0
  %884 = vmatpush1.bf16.msra.mxu0 %v858
  %885 = vmatprep.subr.bf16.mxu0 0
  %886 = vmatpush1.bf16.msra.mxu0 %v857
  %887 = vmatprep.subr.bf16.mxu0 0
  %888 = vmatpush2.bf16.msra.mxu0 0
  %889 = vmatprep.subr.bf16.mxu0 0
  %890 = vmatpush2.bf16.msra.mxu0 0
  %891 = vmatprep.subr.bf16.mxu0 0
  %892 = vmatpush2.bf16.msra.mxu0 0
  %893 = vmatprep.subr.bf16.mxu0 0
  %894 = vmatpush2.bf16.msra.mxu0 0
  %895 = vmatprep.subr.bf16.mxu0 0
  %896 = vmatpush2.bf16.msra.mxu0 0
  %897 = vmatprep.subr.bf16.mxu0 0
  %898 = vmatpush2.bf16.msra.mxu0 0
  %899 = vmatprep.subr.bf16.mxu0 0
  %900 = vmatpush2.bf16.msra.mxu0 0
  %901 = vmatprep.subr.bf16.mxu0 0
  %902 = vmatpush2.bf16.msra.mxu0 0
  %903 = vmatprep.mubr.bf16.mxu0 0
  %904 = vmatmul.mubr.bf16.gmra.mxu0 %v866
  %v905 = vpop.f32.mrf.mxu0
  %v906 = vadd.f32 %v827, %v905
  %v907 = vpop.f32.mrf.mxu0
  %v908 = vpop.f32.mrf.mxu0
  %v909 = vadd.f32 %v830, %v908
  %v910 = vpop.f32.mrf.mxu0
  %911 = vmatprep.mubr.bf16.mxu0 0
  %912 = vmatmul.mubr.bf16.gmra.mxu0 %v869
  %v913 = vpop.f32.mrf.mxu0
  %v914 = vadd.f32 %v835, %v913
  %v915 = vpop.f32.mrf.mxu0
  %v916 = vpop.f32.mrf.mxu0
  %v917 = vadd.f32 %v838, %v916
  %v918 = vpop.f32.mrf.mxu0
  %919 = vdwg.mxu0
  %v920 = vld [vmem:[%s706] sm:$0xff]
  %v921 = vld [vmem:[%s706 + $0x8] sm:$0xff]
  %v922 = vld [vmem:[%s706 + $0x10] sm:$0xff]
  %v923 = vld [vmem:[%s706 + $0x18] sm:$0xff]
  %v924 = vpack.c.bf16 %v921, %v920
  %v925 = vpack.c.bf16 %v923, %v922
  %s926 = scalar_lea.vmem %s3, 64
  %v927 = vld [vmem:[%s926] sm:$0xf]
  %v928 = vld [vmem:[%s926 + $0x4] sm:$0xf]
  %v929 = vld [vmem:[%s926 + $0x8] sm:$0xf]
  %v930 = vld [vmem:[%s926 + $0xc] sm:$0xf]
  %v931 = vld [vmem:[%s926 + $0x10] sm:$0xf]
  %v932 = vld [vmem:[%s926 + $0x14] sm:$0xf]
  %v933 = vld [vmem:[%s926 + $0x18] sm:$0xf]
  %v934 = vld [vmem:[%s926 + $0x1c] sm:$0xf]
  %v943 = vunpack.c.l.b16 %v927
  %v944 = vunpack.c.l.b16 %v928
  %v945 = vunpack.c.l.b16 %v929
  %v946 = vunpack.c.l.b16 %v930
  %v947 = vunpack.c.l.b16 %v931
  %v948 = vunpack.c.l.b16 %v932
  %v949 = vunpack.c.l.b16 %v933
  %v950 = vunpack.c.l.b16 %v934
  %v951 = vpack.c.b16 %v944, %v943
  %v952 = vpack.c.b16 %v946, %v945
  %v953 = vpack.c.b16 %v948, %v947
  %v954 = vpack.c.b16 %v950, %v949
  %v960 = vsel %vm696, %v924, 0
  %v963 = vsel %vm696, %v925, 0
  %965 = vmatprep.subr.bf16.mxu0 0
  %966 = vmatpush1.bf16.msra.mxu0 0
  %967 = vmatprep.subr.bf16.mxu0 0
  %968 = vmatpush1.bf16.msra.mxu0 0
  %969 = vmatprep.subr.bf16.mxu0 0
  %970 = vmatpush1.bf16.msra.mxu0 0
  %971 = vmatprep.subr.bf16.mxu0 0
  %972 = vmatpush1.bf16.msra.mxu0 0
  %973 = vmatprep.subr.bf16.mxu0 0
  %974 = vmatpush1.bf16.msra.mxu0 %v954
  %975 = vmatprep.subr.bf16.mxu0 0
  %976 = vmatpush1.bf16.msra.mxu0 %v953
  %977 = vmatprep.subr.bf16.mxu0 0
  %978 = vmatpush1.bf16.msra.mxu0 %v952
  %979 = vmatprep.subr.bf16.mxu0 0
  %980 = vmatpush1.bf16.msra.mxu0 %v951
  %981 = vmatprep.subr.bf16.mxu0 0
  %982 = vmatpush2.bf16.msra.mxu0 0
  %983 = vmatprep.subr.bf16.mxu0 0
  %984 = vmatpush2.bf16.msra.mxu0 0
  %985 = vmatprep.subr.bf16.mxu0 0
  %986 = vmatpush2.bf16.msra.mxu0 0
  %987 = vmatprep.subr.bf16.mxu0 0
  %988 = vmatpush2.bf16.msra.mxu0 0
  %989 = vmatprep.subr.bf16.mxu0 0
  %990 = vmatpush2.bf16.msra.mxu0 0
  %991 = vmatprep.subr.bf16.mxu0 0
  %992 = vmatpush2.bf16.msra.mxu0 0
  %993 = vmatprep.subr.bf16.mxu0 0
  %994 = vmatpush2.bf16.msra.mxu0 0
  %995 = vmatprep.subr.bf16.mxu0 0
  %996 = vmatpush2.bf16.msra.mxu0 0
  %997 = vmatprep.mubr.bf16.mxu0 0
  %998 = vmatmul.mubr.bf16.gmra.mxu0 %v960
  %v999 = vpop.f32.mrf.mxu0
  %v1000 = vadd.f32 0.0, %v999
  %v1001 = vpop.f32.mrf.mxu0
  %v1002 = vpop.f32.mrf.mxu0
  %v1003 = vadd.f32 0.0, %v1002
  %v1004 = vpop.f32.mrf.mxu0
  %1005 = vmatprep.mubr.bf16.mxu0 0
  %1006 = vmatmul.mubr.bf16.gmra.mxu0 %v963
  %v1007 = vpop.f32.mrf.mxu0
  %v1008 = vadd.f32 0.0, %v1007
  %v1009 = vpop.f32.mrf.mxu0
  %v1010 = vpop.f32.mrf.mxu0
  %v1011 = vadd.f32 0.0, %v1010
  %v1012 = vpop.f32.mrf.mxu0
  %1013 = vdwg.mxu0
  %v1014 = vadd.f32 %v906, %v1000
  %v1015 = vadd.f32 %v909, %v1003
  %v1016 = vadd.f32 %v914, %v1008
  %v1017 = vadd.f32 %v917, %v1011
  %v1018 = vld [vmem:[%s709] sm:$0xff]
  %v1019 = vld [vmem:[%s709 + $0x8] sm:$0xff]
  %v1020 = vld [vmem:[%s709 + $0x10] sm:$0xff]
  %v1021 = vld [vmem:[%s709 + $0x18] sm:$0xff]
  %v1022 = vpack.c.bf16 %v1019, %v1018
  %v1023 = vpack.c.bf16 %v1021, %v1020
  %s1024 = scalar_lea.vmem %s3, 96
  %v1025 = vld [vmem:[%s1024] sm:$0xf]
  %v1026 = vld [vmem:[%s1024 + $0x4] sm:$0xf]
  %v1027 = vld [vmem:[%s1024 + $0x8] sm:$0xf]
  %v1028 = vld [vmem:[%s1024 + $0xc] sm:$0xf]
  %v1029 = vld [vmem:[%s1024 + $0x10] sm:$0xf]
  %v1030 = vld [vmem:[%s1024 + $0x14] sm:$0xf]
  %v1031 = vld [vmem:[%s1024 + $0x18] sm:$0xf]
  %v1032 = vld [vmem:[%s1024 + $0x1c] sm:$0xf]
  %v1041 = vunpack.c.l.b16 %v1025
  %v1042 = vunpack.c.l.b16 %v1026
  %v1043 = vunpack.c.l.b16 %v1027
  %v1044 = vunpack.c.l.b16 %v1028
  %v1045 = vunpack.c.l.b16 %v1029
  %v1046 = vunpack.c.l.b16 %v1030
  %v1047 = vunpack.c.l.b16 %v1031
  %v1048 = vunpack.c.l.b16 %v1032
  %v1049 = vpack.c.b16 %v1042, %v1041
  %v1050 = vpack.c.b16 %v1044, %v1043
  %v1051 = vpack.c.b16 %v1046, %v1045
  %v1052 = vpack.c.b16 %v1048, %v1047
  %v1058 = vsel %vm696, %v1022, 0
  %v1061 = vsel %vm696, %v1023, 0
  %1063 = vmatprep.subr.bf16.mxu0 0
  %1064 = vmatpush1.bf16.msra.mxu0 0
  %1065 = vmatprep.subr.bf16.mxu0 0
  %1066 = vmatpush1.bf16.msra.mxu0 0
  %1067 = vmatprep.subr.bf16.mxu0 0
  %1068 = vmatpush1.bf16.msra.mxu0 0
  %1069 = vmatprep.subr.bf16.mxu0 0
  %1070 = vmatpush1.bf16.msra.mxu0 0
  %1071 = vmatprep.subr.bf16.mxu0 0
  %1072 = vmatpush1.bf16.msra.mxu0 %v1052
  %1073 = vmatprep.subr.bf16.mxu0 0
  %1074 = vmatpush1.bf16.msra.mxu0 %v1051
  %1075 = vmatprep.subr.bf16.mxu0 0
  %1076 = vmatpush1.bf16.msra.mxu0 %v1050
  %1077 = vmatprep.subr.bf16.mxu0 0
  %1078 = vmatpush1.bf16.msra.mxu0 %v1049
  %1079 = vmatprep.subr.bf16.mxu0 0
  %1080 = vmatpush2.bf16.msra.mxu0 0
  %1081 = vmatprep.subr.bf16.mxu0 0
  %1082 = vmatpush2.bf16.msra.mxu0 0
  %1083 = vmatprep.subr.bf16.mxu0 0
  %1084 = vmatpush2.bf16.msra.mxu0 0
  %1085 = vmatprep.subr.bf16.mxu0 0
  %1086 = vmatpush2.bf16.msra.mxu0 0
  %1087 = vmatprep.subr.bf16.mxu0 0
  %1088 = vmatpush2.bf16.msra.mxu0 0
  %1089 = vmatprep.subr.bf16.mxu0 0
  %1090 = vmatpush2.bf16.msra.mxu0 0
  %1091 = vmatprep.subr.bf16.mxu0 0
  %1092 = vmatpush2.bf16.msra.mxu0 0
  %1093 = vmatprep.subr.bf16.mxu0 0
  %1094 = vmatpush2.bf16.msra.mxu0 0
  %1095 = vmatprep.mubr.bf16.mxu0 0
  %1096 = vmatmul.mubr.bf16.gmra.mxu0 %v1058
  %v1097 = vpop.f32.mrf.mxu0
  %v1098 = vadd.f32 0.0, %v1097
  %v1099 = vpop.f32.mrf.mxu0
  %v1100 = vpop.f32.mrf.mxu0
  %v1101 = vadd.f32 0.0, %v1100
  %v1102 = vpop.f32.mrf.mxu0
  %1103 = vmatprep.mubr.bf16.mxu0 0
  %1104 = vmatmul.mubr.bf16.gmra.mxu0 %v1061
  %v1105 = vpop.f32.mrf.mxu0
  %v1106 = vadd.f32 0.0, %v1105
  %v1107 = vpop.f32.mrf.mxu0
  %v1108 = vpop.f32.mrf.mxu0
  %v1109 = vadd.f32 0.0, %v1108
  %v1110 = vpop.f32.mrf.mxu0
  %1111 = vdwg.mxu0
  %v1112 = vadd.f32 %v1014, %v1098
  %v1113 = vadd.f32 %v1015, %v1101
  %v1114 = vadd.f32 %v1016, %v1106
  %v1115 = vadd.f32 %v1017, %v1109
  %v1116 = vld [vmem:[%s714] sm:$0xff]
  %v1117 = vld [vmem:[%s714 + $0x8] sm:$0xff]
  %v1118 = vld [vmem:[%s714 + $0x10] sm:$0xff]
  %v1119 = vld [vmem:[%s714 + $0x18] sm:$0xff]
  %v1120 = vpack.c.bf16 %v1117, %v1116
  %v1121 = vpack.c.bf16 %v1119, %v1118
  %s1122 = scalar_lea.vmem %s3, 128
  %v1123 = vld [vmem:[%s1122] sm:$0xf]
  %v1124 = vld [vmem:[%s1122 + $0x4] sm:$0xf]
  %v1125 = vld [vmem:[%s1122 + $0x8] sm:$0xf]
  %v1126 = vld [vmem:[%s1122 + $0xc] sm:$0xf]
  %v1127 = vld [vmem:[%s1122 + $0x10] sm:$0xf]
  %v1128 = vld [vmem:[%s1122 + $0x14] sm:$0xf]
  %v1129 = vld [vmem:[%s1122 + $0x18] sm:$0xf]
  %v1130 = vld [vmem:[%s1122 + $0x1c] sm:$0xf]
  %v1139 = vunpack.c.l.b16 %v1123
  %v1140 = vunpack.c.l.b16 %v1124
  %v1141 = vunpack.c.l.b16 %v1125
  %v1142 = vunpack.c.l.b16 %v1126
  %v1143 = vunpack.c.l.b16 %v1127
  %v1144 = vunpack.c.l.b16 %v1128
  %v1145 = vunpack.c.l.b16 %v1129
  %v1146 = vunpack.c.l.b16 %v1130
  %v1147 = vpack.c.b16 %v1140, %v1139
  %v1148 = vpack.c.b16 %v1142, %v1141
  %v1149 = vpack.c.b16 %v1144, %v1143
  %v1150 = vpack.c.b16 %v1146, %v1145
  %v1156 = vsel %vm696, %v1120, 0
  %v1159 = vsel %vm696, %v1121, 0
  %1161 = vmatprep.subr.bf16.mxu0 0
  %1162 = vmatpush1.bf16.msra.mxu0 0
  %1163 = vmatprep.subr.bf16.mxu0 0
  %1164 = vmatpush1.bf16.msra.mxu0 0
  %1165 = vmatprep.subr.bf16.mxu0 0
  %1166 = vmatpush1.bf16.msra.mxu0 0
  %1167 = vmatprep.subr.bf16.mxu0 0
  %1168 = vmatpush1.bf16.msra.mxu0 0
  %1169 = vmatprep.subr.bf16.mxu0 0
  %1170 = vmatpush1.bf16.msra.mxu0 %v1150
  %1171 = vmatprep.subr.bf16.mxu0 0
  %1172 = vmatpush1.bf16.msra.mxu0 %v1149
  %1173 = vmatprep.subr.bf16.mxu0 0
  %1174 = vmatpush1.bf16.msra.mxu0 %v1148
  %1175 = vmatprep.subr.bf16.mxu0 0
  %1176 = vmatpush1.bf16.msra.mxu0 %v1147
  %1177 = vmatprep.subr.bf16.mxu0 0
  %1178 = vmatpush2.bf16.msra.mxu0 0
  %1179 = vmatprep.subr.bf16.mxu0 0
  %1180 = vmatpush2.bf16.msra.mxu0 0
  %1181 = vmatprep.subr.bf16.mxu0 0
  %1182 = vmatpush2.bf16.msra.mxu0 0
  %1183 = vmatprep.subr.bf16.mxu0 0
  %1184 = vmatpush2.bf16.msra.mxu0 0
  %1185 = vmatprep.subr.bf16.mxu0 0
  %1186 = vmatpush2.bf16.msra.mxu0 0
  %1187 = vmatprep.subr.bf16.mxu0 0
  %1188 = vmatpush2.bf16.msra.mxu0 0
  %1189 = vmatprep.subr.bf16.mxu0 0
  %1190 = vmatpush2.bf16.msra.mxu0 0
  %1191 = vmatprep.subr.bf16.mxu0 0
  %1192 = vmatpush2.bf16.msra.mxu0 0
  %1193 = vmatprep.mubr.bf16.mxu0 0
  %1194 = vmatmul.mubr.bf16.gmra.mxu0 %v1156
  %v1195 = vpop.f32.mrf.mxu0
  %v1196 = vadd.f32 0.0, %v1195
  %v1197 = vpop.f32.mrf.mxu0
  %v1198 = vpop.f32.mrf.mxu0
  %v1199 = vadd.f32 0.0, %v1198
  %v1200 = vpop.f32.mrf.mxu0
  %1201 = vmatprep.mubr.bf16.mxu0 0
  %1202 = vmatmul.mubr.bf16.gmra.mxu0 %v1159
  %v1203 = vpop.f32.mrf.mxu0
  %v1204 = vadd.f32 0.0, %v1203
  %v1205 = vpop.f32.mrf.mxu0
  %v1206 = vpop.f32.mrf.mxu0
  %v1207 = vadd.f32 0.0, %v1206
  %v1208 = vpop.f32.mrf.mxu0
  %1209 = vdwg.mxu0
  %v1210 = vadd.f32 %v1112, %v1196
  %v1211 = vadd.f32 %v1113, %v1199
  %v1212 = vadd.f32 %v1114, %v1204
  %v1213 = vadd.f32 %v1115, %v1207
  %v1214 = vld [vmem:[%s4] sm:$0x1]
  %v1216 = vlaneseq
  %v1217 = vshrl.u32 %v1216, 7
  %v1218 = vsub.s32 0, %v1217
  %v1219 = vrot.slane %v1214, %v1218
  %v1221 = vadd.f32 %v1210, %v1219
  %v1222 = vadd.f32 %v1211, %v1219
  %v1223 = vadd.f32 %v1212, %v1219
  %v1224 = vadd.f32 %v1213, %v1219
  %v1225 = vmax.f32 %v1221, 0.0
  %v1226 = vmax.f32 %v1222, 0.0
  %v1227 = vmax.f32 %v1223, 0.0
  %v1228 = vmax.f32 %v1224, 0.0
  %1229 = vst.msk [vmem:[#allocation4] sm:$0x1] %vm701, 0.0
  %1230 = vst.msk [vmem:[#allocation4 + $0x1] sm:$0xff] %vm696, %v1225
  %1231 = vst.msk [vmem:[#allocation4 + $0x9] sm:$0x7f] %vm704, %v1226
  %s1232 = scalar_lea.vmem [#allocation4], 32
  %1233 = vst.msk [vmem:[%s1232] sm:$0xff] %vm696, %v1225
  %1234 = vst.msk [vmem:[%s1232 + $0x8] sm:$0xff] %vm696, %v1226
  %s1235 = scalar_lea.vmem [#allocation4], 64
  %1236 = vst.msk [vmem:[%s1235 - $0x1] sm:$0xfe] %vm710, %v1225
  %1237 = vst.msk [vmem:[%s1235 + $0x7] sm:$0xff] %vm696, %v1226
  %1238 = vst.msk [vmem:[%s1235 + $0xf] sm:$0x1] %vm701, 0.0
  %1239 = vst.msk [vmem:[#allocation4 + $0x10] sm:$0x1] %vm701, 0.0
  %1240 = vst.msk [vmem:[#allocation4 + $0x11] sm:$0xff] %vm696, %v1227
  %1241 = vst.msk [vmem:[#allocation4 + $0x19] sm:$0x7f] %vm704, %v1228
  %1242 = vst.msk [vmem:[%s1232 + $0x10] sm:$0xff] %vm696, %v1227
  %1243 = vst.msk [vmem:[%s1232 + $0x18] sm:$0xff] %vm696, %v1228
  %1244 = vst.msk [vmem:[%s1235 + $0xf] sm:$0xfe] %vm710, %v1227
  %1245 = vst.msk [vmem:[%s1235 + $0x17] sm:$0xff] %vm696, %v1228
  %1246 = vst.msk [vmem:[%s1235 + $0x1f] sm:$0x1] %vm701, 0.0
  %v1247 = vld [vmem:[#allocation4] sm:$0xff]
  %v1248 = vld [vmem:[#allocation4 + $0x8] sm:$0xff]
  %v1249 = vld [vmem:[#allocation4 + $0x10] sm:$0xff]
  %v1250 = vld [vmem:[#allocation4 + $0x18] sm:$0xff]
  %v1251 = vpack.c.bf16 %v1248, %v1247
  %v1252 = vpack.c.bf16 %v1250, %v1249
  %v1253 = vld [vmem:[%s5] sm:$0xff]
  %v1254 = vld [vmem:[%s5 + $0x8] sm:$0xff]
  %v1255 = vld [vmem:[%s5 + $0x10] sm:$0xff]
  %v1256 = vld [vmem:[%s5 + $0x18] sm:$0xff]
  %v1257 = vld [vmem:[%s5 + $0x20] sm:$0xff]
  %v1258 = vld [vmem:[%s5 + $0x28] sm:$0xff]
  %v1259 = vld [vmem:[%s5 + $0x30] sm:$0xff]
  %v1260 = vld [vmem:[%s5 + $0x38] sm:$0xff]
  %v1261 = vld [vmem:[%s1232] sm:$0xff]
  %v1262 = vld [vmem:[%s1232 + $0x8] sm:$0xff]
  %v1263 = vld [vmem:[%s1232 + $0x10] sm:$0xff]
  %v1264 = vld [vmem:[%s1232 + $0x18] sm:$0xff]
  %v1265 = vpack.c.bf16 %v1262, %v1261
  %v1266 = vpack.c.bf16 %v1264, %v1263
  %s1267 = scalar_lea.vmem %s5, 64
  %v1268 = vld [vmem:[%s1267] sm:$0xff]
  %v1269 = vld [vmem:[%s1267 + $0x8] sm:$0xff]
  %v1270 = vld [vmem:[%s1267 + $0x10] sm:$0xff]
  %v1271 = vld [vmem:[%s1267 + $0x18] sm:$0xff]
  %v1272 = vld [vmem:[%s1267 + $0x20] sm:$0xff]
  %v1273 = vld [vmem:[%s1267 + $0x28] sm:$0xff]
  %v1274 = vld [vmem:[%s1267 + $0x30] sm:$0xff]
  %v1275 = vld [vmem:[%s1267 + $0x38] sm:$0xff]
  %v1284 = vunpack.c.l.b16 %v1268
  %v1285 = vunpack.c.h.b16 %v1268
  %v1286 = vunpack.c.l.b16 %v1269
  %v1287 = vunpack.c.h.b16 %v1269
  %v1288 = vunpack.c.l.b16 %v1270
  %v1289 = vunpack.c.h.b16 %v1270
  %v1290 = vunpack.c.l.b16 %v1271
  %v1291 = vunpack.c.h.b16 %v1271
  %v1292 = vunpack.c.l.b16 %v1272
  %v1293 = vunpack.c.h.b16 %v1272
  %v1294 = vunpack.c.l.b16 %v1273
  %v1295 = vunpack.c.h.b16 %v1273
  %v1296 = vunpack.c.l.b16 %v1274
  %v1297 = vunpack.c.h.b16 %v1274
  %v1298 = vunpack.c.l.b16 %v1275
  %v1299 = vunpack.c.h.b16 %v1275
  %v1300 = vpack.c.b16 %v1286, %v1284
  %v1301 = vpack.c.b16 %v1287, %v1285
  %v1302 = vpack.c.b16 %v1290, %v1288
  %v1303 = vpack.c.b16 %v1291, %v1289
  %v1304 = vpack.c.b16 %v1294, %v1292
  %v1305 = vpack.c.b16 %v1295, %v1293
  %v1306 = vpack.c.b16 %v1298, %v1296
  %v1307 = vpack.c.b16 %v1299, %v1297
  %v1317 = vsel %vm696, %v1265, 0
  %v1320 = vsel %vm696, %v1266, 0
  %1322 = vmatprep.subr.bf16.mxu0 0
  %1323 = vmatpush1.bf16.msra.mxu0 0
  %1324 = vmatprep.subr.bf16.mxu0 0
  %1325 = vmatpush1.bf16.msra.mxu0 0
  %1326 = vmatprep.subr.bf16.mxu0 0
  %1327 = vmatpush1.bf16.msra.mxu0 0
  %1328 = vmatprep.subr.bf16.mxu0 0
  %1329 = vmatpush1.bf16.msra.mxu0 0
  %1330 = vmatprep.subr.bf16.mxu0 %v1307
  %1331 = vmatpush1.bf16.msra.mxu0 %v1306
  %1332 = vmatprep.subr.bf16.mxu0 %v1305
  %1333 = vmatpush1.bf16.msra.mxu0 %v1304
  %1334 = vmatprep.subr.bf16.mxu0 %v1303
  %1335 = vmatpush1.bf16.msra.mxu0 %v1302
  %1336 = vmatprep.subr.bf16.mxu0 %v1301
  %1337 = vmatpush1.bf16.msra.mxu0 %v1300
  %1338 = vmatprep.subr.bf16.mxu0 0
  %1339 = vmatpush2.bf16.msra.mxu0 0
  %1340 = vmatprep.subr.bf16.mxu0 0
  %1341 = vmatpush2.bf16.msra.mxu0 0
  %1342 = vmatprep.subr.bf16.mxu0 0
  %1343 = vmatpush2.bf16.msra.mxu0 0
  %1344 = vmatprep.subr.bf16.mxu0 0
  %1345 = vmatpush2.bf16.msra.mxu0 0
  %1346 = vmatprep.subr.bf16.mxu0 0
  %1347 = vmatpush2.bf16.msra.mxu0 0
  %1348 = vmatprep.subr.bf16.mxu0 0
  %1349 = vmatpush2.bf16.msra.mxu0 0
  %1350 = vmatprep.subr.bf16.mxu0 0
  %1351 = vmatpush2.bf16.msra.mxu0 0
  %1352 = vmatprep.subr.bf16.mxu0 0
  %1353 = vmatpush2.bf16.msra.mxu0 0
  %1354 = vmatprep.mubr.bf16.mxu0 0
  %1355 = vmatmul.mubr.bf16.gmra.mxu0 %v1317
  %v1356 = vpop.f32.mrf.mxu0
  %v1357 = vadd.f32 0.0, %v1356
  %v1358 = vpop.f32.mrf.mxu0
  %v1359 = vadd.f32 0.0, %v1358
  %v1360 = vpop.f32.mrf.mxu0
  %v1361 = vadd.f32 0.0, %v1360
  %v1362 = vpop.f32.mrf.mxu0
  %v1363 = vadd.f32 0.0, %v1362
  %1364 = vmatprep.mubr.bf16.mxu0 0
  %1365 = vmatmul.mubr.bf16.gmra.mxu0 %v1320
  %v1366 = vpop.f32.mrf.mxu0
  %v1367 = vadd.f32 0.0, %v1366
  %v1368 = vpop.f32.mrf.mxu0
  %v1369 = vadd.f32 0.0, %v1368
  %v1370 = vpop.f32.mrf.mxu0
  %v1371 = vadd.f32 0.0, %v1370
  %v1372 = vpop.f32.mrf.mxu0
  %v1373 = vadd.f32 0.0, %v1372
  %1374 = vdwg.mxu0
  %v1383 = vunpack.c.l.b16 %v1253
  %v1384 = vunpack.c.h.b16 %v1253
  %v1385 = vunpack.c.l.b16 %v1254
  %v1386 = vunpack.c.h.b16 %v1254
  %v1387 = vunpack.c.l.b16 %v1255
  %v1388 = vunpack.c.h.b16 %v1255
  %v1389 = vunpack.c.l.b16 %v1256
  %v1390 = vunpack.c.h.b16 %v1256
  %v1391 = vunpack.c.l.b16 %v1257
  %v1392 = vunpack.c.h.b16 %v1257
  %v1393 = vunpack.c.l.b16 %v1258
  %v1394 = vunpack.c.h.b16 %v1258
  %v1395 = vunpack.c.l.b16 %v1259
  %v1396 = vunpack.c.h.b16 %v1259
  %v1397 = vunpack.c.l.b16 %v1260
  %v1398 = vunpack.c.h.b16 %v1260
  %v1399 = vpack.c.b16 %v1385, %v1383
  %v1400 = vpack.c.b16 %v1386, %v1384
  %v1401 = vpack.c.b16 %v1389, %v1387
  %v1402 = vpack.c.b16 %v1390, %v1388
  %v1403 = vpack.c.b16 %v1393, %v1391
  %v1404 = vpack.c.b16 %v1394, %v1392
  %v1405 = vpack.c.b16 %v1397, %v1395
  %v1406 = vpack.c.b16 %v1398, %v1396
  %v1416 = vsel %vm696, %v1251, 0
  %v1419 = vsel %vm696, %v1252, 0
  %1421 = vmatprep.subr.bf16.mxu0 0
  %1422 = vmatpush1.bf16.msra.mxu0 0
  %1423 = vmatprep.subr.bf16.mxu0 0
  %1424 = vmatpush1.bf16.msra.mxu0 0
  %1425 = vmatprep.subr.bf16.mxu0 0
  %1426 = vmatpush1.bf16.msra.mxu0 0
  %1427 = vmatprep.subr.bf16.mxu0 0
  %1428 = vmatpush1.bf16.msra.mxu0 0
  %1429 = vmatprep.subr.bf16.mxu0 %v1406
  %1430 = vmatpush1.bf16.msra.mxu0 %v1405
  %1431 = vmatprep.subr.bf16.mxu0 %v1404
  %1432 = vmatpush1.bf16.msra.mxu0 %v1403
  %1433 = vmatprep.subr.bf16.mxu0 %v1402
  %1434 = vmatpush1.bf16.msra.mxu0 %v1401
  %1435 = vmatprep.subr.bf16.mxu0 %v1400
  %1436 = vmatpush1.bf16.msra.mxu0 %v1399
  %1437 = vmatprep.subr.bf16.mxu0 0
  %1438 = vmatpush2.bf16.msra.mxu0 0
  %1439 = vmatprep.subr.bf16.mxu0 0
  %1440 = vmatpush2.bf16.msra.mxu0 0
  %1441 = vmatprep.subr.bf16.mxu0 0
  %1442 = vmatpush2.bf16.msra.mxu0 0
  %1443 = vmatprep.subr.bf16.mxu0 0
  %1444 = vmatpush2.bf16.msra.mxu0 0
  %1445 = vmatprep.subr.bf16.mxu0 0
  %1446 = vmatpush2.bf16.msra.mxu0 0
  %1447 = vmatprep.subr.bf16.mxu0 0
  %1448 = vmatpush2.bf16.msra.mxu0 0
  %1449 = vmatprep.subr.bf16.mxu0 0
  %1450 = vmatpush2.bf16.msra.mxu0 0
  %1451 = vmatprep.subr.bf16.mxu0 0
  %1452 = vmatpush2.bf16.msra.mxu0 0
  %1453 = vmatprep.mubr.bf16.mxu0 0
  %1454 = vmatmul.mubr.bf16.gmra.mxu0 %v1416
  %v1455 = vpop.f32.mrf.mxu0
  %v1456 = vadd.f32 %v1357, %v1455
  %v1457 = vpop.f32.mrf.mxu0
  %v1458 = vadd.f32 %v1359, %v1457
  %v1459 = vpop.f32.mrf.mxu0
  %v1460 = vadd.f32 %v1361, %v1459
  %v1461 = vpop.f32.mrf.mxu0
  %v1462 = vadd.f32 %v1363, %v1461
  %1463 = vmatprep.mubr.bf16.mxu0 0
  %1464 = vmatmul.mubr.bf16.gmra.mxu0 %v1419
  %v1465 = vpop.f32.mrf.mxu0
  %v1466 = vadd.f32 %v1367, %v1465
  %v1467 = vpop.f32.mrf.mxu0
  %v1468 = vadd.f32 %v1369, %v1467
  %v1469 = vpop.f32.mrf.mxu0
  %v1470 = vadd.f32 %v1371, %v1469
  %v1471 = vpop.f32.mrf.mxu0
  %v1472 = vadd.f32 %v1373, %v1471
  %1473 = vdwg.mxu0
  %v1474 = vld [vmem:[%s1235] sm:$0xff]
  %v1475 = vld [vmem:[%s1235 + $0x8] sm:$0xff]
  %v1476 = vld [vmem:[%s1235 + $0x10] sm:$0xff]
  %v1477 = vld [vmem:[%s1235 + $0x18] sm:$0xff]
  %v1478 = vpack.c.bf16 %v1475, %v1474
  %v1479 = vpack.c.bf16 %v1477, %v1476
  %s1480 = scalar_lea.vmem %s5, 128
  %v1481 = vld [vmem:[%s1480] sm:$0xff]
  %v1482 = vld [vmem:[%s1480 + $0x8] sm:$0xff]
  %v1483 = vld [vmem:[%s1480 + $0x10] sm:$0xff]
  %v1484 = vld [vmem:[%s1480 + $0x18] sm:$0xff]
  %v1485 = vld [vmem:[%s1480 + $0x20] sm:$0xff]
  %v1486 = vld [vmem:[%s1480 + $0x28] sm:$0xff]
  %v1487 = vld [vmem:[%s1480 + $0x30] sm:$0xff]
  %v1488 = vld [vmem:[%s1480 + $0x38] sm:$0xff]
  %v1497 = vunpack.c.l.b16 %v1481
  %v1498 = vunpack.c.h.b16 %v1481
  %v1499 = vunpack.c.l.b16 %v1482
  %v1500 = vunpack.c.h.b16 %v1482
  %v1501 = vunpack.c.l.b16 %v1483
  %v1502 = vunpack.c.h.b16 %v1483
  %v1503 = vunpack.c.l.b16 %v1484
  %v1504 = vunpack.c.h.b16 %v1484
  %v1505 = vunpack.c.l.b16 %v1485
  %v1506 = vunpack.c.h.b16 %v1485
  %v1507 = vunpack.c.l.b16 %v1486
  %v1508 = vunpack.c.h.b16 %v1486
  %v1509 = vunpack.c.l.b16 %v1487
  %v1510 = vunpack.c.h.b16 %v1487
  %v1511 = vunpack.c.l.b16 %v1488
  %v1512 = vunpack.c.h.b16 %v1488
  %v1513 = vpack.c.b16 %v1499, %v1497
  %v1514 = vpack.c.b16 %v1500, %v1498
  %v1515 = vpack.c.b16 %v1503, %v1501
  %v1516 = vpack.c.b16 %v1504, %v1502
  %v1517 = vpack.c.b16 %v1507, %v1505
  %v1518 = vpack.c.b16 %v1508, %v1506
  %v1519 = vpack.c.b16 %v1511, %v1509
  %v1520 = vpack.c.b16 %v1512, %v1510
  %v1530 = vsel %vm696, %v1478, 0
  %v1533 = vsel %vm696, %v1479, 0
  %1535 = vmatprep.subr.bf16.mxu0 0
  %1536 = vmatpush1.bf16.msra.mxu0 0
  %1537 = vmatprep.subr.bf16.mxu0 0
  %1538 = vmatpush1.bf16.msra.mxu0 0
  %1539 = vmatprep.subr.bf16.mxu0 0
  %1540 = vmatpush1.bf16.msra.mxu0 0
  %1541 = vmatprep.subr.bf16.mxu0 0
  %1542 = vmatpush1.bf16.msra.mxu0 0
  %1543 = vmatprep.subr.bf16.mxu0 %v1520
  %1544 = vmatpush1.bf16.msra.mxu0 %v1519
  %1545 = vmatprep.subr.bf16.mxu0 %v1518
  %1546 = vmatpush1.bf16.msra.mxu0 %v1517
  %1547 = vmatprep.subr.bf16.mxu0 %v1516
  %1548 = vmatpush1.bf16.msra.mxu0 %v1515
  %1549 = vmatprep.subr.bf16.mxu0 %v1514
  %1550 = vmatpush1.bf16.msra.mxu0 %v1513
  %1551 = vmatprep.subr.bf16.mxu0 0
  %1552 = vmatpush2.bf16.msra.mxu0 0
  %1553 = vmatprep.subr.bf16.mxu0 0
  %1554 = vmatpush2.bf16.msra.mxu0 0
  %1555 = vmatprep.subr.bf16.mxu0 0
  %1556 = vmatpush2.bf16.msra.mxu0 0
  %1557 = vmatprep.subr.bf16.mxu0 0
  %1558 = vmatpush2.bf16.msra.mxu0 0
  %1559 = vmatprep.subr.bf16.mxu0 0
  %1560 = vmatpush2.bf16.msra.mxu0 0
  %1561 = vmatprep.subr.bf16.mxu0 0
  %1562 = vmatpush2.bf16.msra.mxu0 0
  %1563 = vmatprep.subr.bf16.mxu0 0
  %1564 = vmatpush2.bf16.msra.mxu0 0
  %1565 = vmatprep.subr.bf16.mxu0 0
  %1566 = vmatpush2.bf16.msra.mxu0 0
  %1567 = vmatprep.mubr.bf16.mxu0 0
  %1568 = vmatmul.mubr.bf16.gmra.mxu0 %v1530
  %v1569 = vpop.f32.mrf.mxu0
  %v1570 = vadd.f32 0.0, %v1569
  %v1571 = vpop.f32.mrf.mxu0
  %v1572 = vadd.f32 0.0, %v1571
  %v1573 = vpop.f32.mrf.mxu0
  %v1574 = vadd.f32 0.0, %v1573
  %v1575 = vpop.f32.mrf.mxu0
  %v1576 = vadd.f32 0.0, %v1575
  %1577 = vmatprep.mubr.bf16.mxu0 0
  %1578 = vmatmul.mubr.bf16.gmra.mxu0 %v1533
  %v1579 = vpop.f32.mrf.mxu0
  %v1580 = vadd.f32 0.0, %v1579
  %v1581 = vpop.f32.mrf.mxu0
  %v1582 = vadd.f32 0.0, %v1581
  %v1583 = vpop.f32.mrf.mxu0
  %v1584 = vadd.f32 0.0, %v1583
  %v1585 = vpop.f32.mrf.mxu0
  %v1586 = vadd.f32 0.0, %v1585
  %1587 = vdwg.mxu0
  %v1588 = vadd.f32 %v1456, %v1570
  %v1589 = vadd.f32 %v1458, %v1572
  %v1590 = vadd.f32 %v1460, %v1574
  %v1591 = vadd.f32 %v1462, %v1576
  %v1592 = vadd.f32 %v1466, %v1580
  %v1593 = vadd.f32 %v1468, %v1582
  %v1594 = vadd.f32 %v1470, %v1584
  %v1595 = vadd.f32 %v1472, %v1586
  %v1596 = vld [vmem:[%s6] sm:$0x3]
  %v1598 = vlaneseq
  %v1599 = vshrl.u32 %v1598, 7
  %v1600 = vsub.s32 0, %v1599
  %v1601 = vrot.slane %v1596, %v1600
  %v1602 = vlaneseq
  %v1603 = vshrl.u32 %v1602, 7
  %v1604 = vsub.s32 1, %v1603
  %v1605 = vrot.slane %v1596, %v1604
  %v1608 = vadd.f32 %v1588, %v1601
  %v1609 = vadd.f32 %v1589, %v1605
  %v1610 = vadd.f32 %v1590, %v1601
  %v1611 = vadd.f32 %v1591, %v1605
  %v1612 = vadd.f32 %v1592, %v1601
  %v1613 = vadd.f32 %v1593, %v1605
  %v1614 = vadd.f32 %v1594, %v1601
  %v1615 = vadd.f32 %v1595, %v1605
  %1616 = vst [vmem:[%s7] sm:$0xff] %v1608
  %1617 = vst [vmem:[%s7 + $0x8] sm:$0xff] %v1609
  %1618 = vst [vmem:[%s7 + $0x10] sm:$0xff] %v1610
  %1619 = vst [vmem:[%s7 + $0x18] sm:$0xff] %v1611
  %s1620 = scalar_lea.vmem %s7, 32
  %1621 = vst [vmem:[%s1620] sm:$0xff] %v1612
  %1622 = vst [vmem:[%s1620 + $0x8] sm:$0xff] %v1613
  %1623 = vst [vmem:[%s1620 + $0x10] sm:$0xff] %v1614
  %1624 = vst [vmem:[%s1620 + $0x18] sm:$0xff] %v1615
  // Predicated region
  $region30: #{_lambda_.1} parent=0 // pred_check
    _
  $region31: #{_lambda_.1} parent=0 // pred_check_branch
    %1626 = sbr.rel (0) target = $region33
  $region32: #{_lambda_.1} parent=0 // pred_region
    _
  $region33: #{_lambda_.1} parent=0 // pred_fallthru
    _
  // Predicated region
  $region34: #{_lambda_.1} parent=0 // pred_check
    _
  $region35: #{_lambda_.1} parent=0 // pred_check_branch
    %1628 = sbr.rel (0) target = $region37
  $region36: #{_lambda_.1} parent=0 // pred_region
    _
  $region37: #{_lambda_.1} parent=0 // pred_fallthru
    _

</llo_original>
